<compile_context>
chip_gen: v6e
topology: v6e:2x2x1
jax: 0.10.0
libtpu: 0.0.40
codegen_flags: <defaults>
</compile_context>

<pallas_src>
import jax
import jax.numpy as jnp
from jax.experimental import pallas as pl
from jax.experimental.pallas import tpu as pltpu


def fused_permute_linear_kernel(x_ref, w1_ref, b1_ref, w2_ref, b2_ref,
                                o_ref, v4t_ref):
    """One (i, j, k) grid step of the fused permute/linear/linear chain.

    Refs per step:
      x_ref   (D1, tD2)   squeezed x1 tile (k-slice of the 2nd contraction)
      w1_ref  (tH1, D1)   linear1 weight tile      (depends on i only)
      b1_ref  (tH1, 1)    linear1 bias column      (depends on i only)
      w2_ref  (tH2, tD2)  linear2 weight tile, UN-transposed
      b2_ref  (tH2, 1)    linear2 bias column
      o_ref   (tH2, tH1)  v6 = v5.T tile, resident across k, used as the acc
      v4t_ref (D2, tH1)   VMEM cache of v4.T for the current i block
    """
    j = pl.program_id(1)
    k = pl.program_id(2)
    td2 = x_ref.shape[-1]
    row0 = pl.multiple_of(k * td2, td2)

    @pl.when(j == 0)
    def _fill_v4t_cache():
        # v4 tile: (tH1, tD2) = W1_tile @ x_tile + b1_col (canonical MXU
        # layout).  Adding b1 here is correct because D1 is fully contracted
        # in one step; if D1 ever gets tiled this add must move to a finalize.
        a = jnp.dot(w1_ref[...], x_ref[...],
                    preferred_element_type=jnp.float32) + b1_ref[...]
        # Store transposed (XLU slot, off the MXU/VALU critical path) so the
        # second matmul is also canonical and the kernel writes v6 directly.
        v4t_ref[pl.ds(row0, td2), :] = a.T

    @pl.when(k == 0)
    def _init_out():
        # Initialize the resident output block with the linear2 bias column;
        # accumulation then runs directly in o_ref (output dtype is f32 —
        # a bf16 output would need a separate f32 scratch again).
        o_ref[...] = jnp.broadcast_to(b2_ref[...], o_ref.shape)

    # v6 partial tile: (tH2, tH1) += W2_tile (tH2, tD2) @ v4.T_tile (tD2, tH1)
    o_ref[...] += jnp.dot(w2_ref[...], v4t_ref[pl.ds(row0, td2), :],
                          preferred_element_type=jnp.float32)


def model_forward(x1, w1, b1, w2, b2, *, th1=256, th2=256, td2=512):
    """x1: (1, D1, D2); w1: (H1, D1); b1: (H1,); w2: (H2, D2); b2: (H2,).

    Returns v6 with shape (H2, H1), matching the PyTorch forward.
    """
    _, d1, d2 = x1.shape
    h1, w1_d1 = w1.shape
    h2, w2_d2 = w2.shape
    assert w1_d1 == d1 and w2_d2 == d2, (x1.shape, w1.shape, w2.shape)

    # Clamp tiles to the problem and require even tiling for this demo.
    th1 = min(th1, h1)
    th2 = min(th2, h2)
    td2 = min(td2, d2)
    assert h1 % th1 == 0 and h2 % th2 == 0 and d2 % td2 == 0, (h1, h2, d2)
    # (8, 128) layout constraints on the tiled block dims.
    assert th1 % 128 == 0 and th2 % 128 == 0 and td2 % 128 == 0 and d1 % 8 == 0

    # Tiny one-time layout plumbing (bias columns).  There is no w2.T in the
    # hot path any more: the final permute is folded into the contraction by
    # computing v6 = W2 @ v4.T + b2 instead of v5.
    b1c = b1.reshape(h1, 1)
    b2c = b2.reshape(h2, 1)

    grid = (h1 // th1, h2 // th2, d2 // td2)   # demo: (2, 1, 1)

    def x_index_map(i, j, k):
        # x is only consumed while filling the v4.T cache (j == 0); for j > 0
        # keep requesting block 0 so the pipeline does not re-stream x.
        return (0, 0, jnp.where(j == 0, k, 0))

    grid_spec = pltpu.PrefetchScalarGridSpec(
        num_scalar_prefetch=0,
        grid=grid,
        in_specs=[
            # x1 (1, D1, D2): leading dim squeezed inside the BlockSpec.
            # TODO(synk): D1 is untiled; tile it (with a v4 partial
            # accumulator) before running very large D1 on v7x's 64 MiB VMEM.
            pl.BlockSpec((pl.Squeezed(), d1, td2), x_index_map),
            # W1 (H1, D1) / b1: depend only on i -> fetched once per i.
            pl.BlockSpec((th1, d1), lambda i, j, k: (i, 0)),
            pl.BlockSpec((th1, 1), lambda i, j, k: (i, 0)),
            # W2 (H2, D2): reduction tiles along k, output tiles along j.
            pl.BlockSpec((th2, td2), lambda i, j, k: (j, k)),
            pl.BlockSpec((th2, 1), lambda i, j, k: (j, 0)),
        ],
        # Output already transposed (v6): its block index is constant across
        # k, so it stays resident in VMEM and doubles as the accumulator.
        out_specs=pl.BlockSpec((th2, th1), lambda i, j, k: (j, i)),
        scratch_shapes=[pltpu.VMEM((d2, th1), jnp.float32)],
    )

    return pl.pallas_call(
        fused_permute_linear_kernel,
        out_shape=jax.ShapeDtypeStruct((h2, h1), jnp.float32),
        grid_spec=grid_spec,
        compiler_params=pltpu.CompilerParams(
            # i is the only parallel axis (j carries the v4.T-cache dependency
            # and k the accumulator); keep >= 2 i-blocks for v7x megacore.
            dimension_semantics=("parallel", "arbitrary", "arbitrary")),
    )(x1, w1, b1c, w2, b2c)


def reference_forward(x1, w1, b1, w2, b2):
    """Pure-JAX transcription of the PyTorch forward (repaired linear2)."""
    v1 = jnp.squeeze(x1, axis=0)
    v2 = v1.T
    v3 = jnp.dot(v2, w1.T, precision=jax.lax.Precision.HIGHEST) + b1
    v4 = v3.T
    v5 = jnp.dot(v4, w2.T, precision=jax.lax.Precision.HIGHEST) + b2
    v6 = v5.T
    return v6


if __name__ == "__main__":
    # Shapes implied by the forward: x1 (1, D1, D2), linear1: D1 -> H1,
    # linear2: D2 -> H2.  Scaled to (8,128)-aligned sizes so the kernel does
    # real MXU work; H1 = 2*th1 keeps two parallel i-blocks for v7x megacore
    # while the grid stays collapsed at (2, 1, 1).
    D1, D2, H1, H2 = 128, 256, 512, 256

    key = jax.random.PRNGKey(0)
    k_x, k_w1, k_b1, k_w2, k_b2 = jax.random.split(key, 5)

    x1 = jax.random.normal(k_x, (1, D1, D2), dtype=jnp.float32)
    # Deterministic synthetic "Linear" params (no checkpoint load).
    w1 = jax.random.normal(k_w1, (H1, D1), dtype=jnp.float32) * 0.05   # linear1.weight
    b1 = jax.random.normal(k_b1, (H1,), dtype=jnp.float32) * 0.05      # linear1.bias
    w2 = jax.random.normal(k_w2, (H2, D2), dtype=jnp.float32) * 0.05   # linear2.weight
    b2 = jax.random.normal(k_b2, (H2,), dtype=jnp.float32) * 0.05      # linear2.bias

    out = model_forward(x1, w1, b1, w2, b2)
    out = jax.block_until_ready(out)

    ref = reference_forward(x1, w1, b1, w2, b2)
    assert out.shape == (H2, H1), out.shape
    # Tolerance covers MXU bf16-pass f32 matmuls vs the HIGHEST-precision
    # reference; structural errors (wrong permute / missing bias) are O(1).
    max_err = float(jnp.max(jnp.abs(out - ref)))
    assert jnp.allclose(out, ref, atol=2e-2, rtol=2e-2), max_err

    print("KERNEL_OK")
</pallas_src>

<mosaic_0001>
module attributes {stable_mosaic.version = 11 : i64} {
  func.func @fused_permute_linear_kernel(%arg0: i32, %arg1: i32, %arg2: i32, %arg3: memref<1x128x256xf32, #tpu.memory_space<vmem>>, %arg4: memref<256x128xf32, #tpu.memory_space<vmem>>, %arg5: memref<256x1xf32, #tpu.memory_space<vmem>>, %arg6: memref<256x256xf32, #tpu.memory_space<vmem>>, %arg7: memref<256x1xf32, #tpu.memory_space<vmem>>, %arg8: memref<256x256xf32, #tpu.memory_space<vmem>>, %arg9: memref<256x256xf32, #tpu.memory_space<vmem>>) attributes {dimension_semantics = [#tpu.dimension_semantics<parallel>, #tpu.dimension_semantics<arbitrary>, #tpu.dimension_semantics<arbitrary>], iteration_bounds = array<i64: 2, 1, 1>, scalar_prefetch = 0 : i64, scratch_operands = 1 : i64, tpu.core_type = #tpu.core_type<tc>, window_params = [{transform_indices = @transform_0, window_bounds = array<i64: 1, 128, 256>}, {transform_indices = @transform_1, window_bounds = array<i64: 256, 128>}, {transform_indices = @transform_2, window_bounds = array<i64: 256, 1>}, {transform_indices = @transform_3, window_bounds = array<i64: 256, 256>}, {transform_indices = @transform_4, window_bounds = array<i64: 256, 1>}, {transform_indices = @transform_5, window_bounds = array<i64: 256, 256>}]} {
    %c256_i32 = arith.constant 256 : i32
    %0 = arith.muli %arg2, %c256_i32 : i32
    %1 = tpu.assume_multiple %0, 256 : i32
    %c0_i32 = arith.constant 0 : i32
    %2 = arith.cmpi eq, %arg1, %c0_i32 : i32
    %3 = arith.extui %2 : i1 to i32
    %c0_i32_0 = arith.constant 0 : i32
    %4 = arith.cmpi ne, %3, %c0_i32_0 : i32
    scf.if %4 {
      %c0_9 = arith.constant 0 : index
      %c0_10 = arith.constant 0 : index
      %15 = vector.load %arg4[%c0_9, %c0_10] : memref<256x128xf32, #tpu.memory_space<vmem>>, vector<256x128xf32>
      %c0_11 = arith.constant 0 : index
      %c0_12 = arith.constant 0 : index
      %c0_13 = arith.constant 0 : index
      %16 = vector.load %arg3[%c0_11, %c0_12, %c0_13] : memref<1x128x256xf32, #tpu.memory_space<vmem>>, vector<1x128x256xf32>
      %17 = vector.shape_cast %16 : vector<1x128x256xf32> to vector<128x256xf32>
      %cst_14 = arith.constant dense<0.000000e+00> : vector<256x256xf32>
      %18 = tpu.matmul %15, %17, %cst_14 {dimension_numbers = #tpu.dot_dimension_numbers<[1], [0], [0], [1], [0, 0, 1, 1], [], []>} : vector<256x128xf32>, vector<128x256xf32>, vector<256x256xf32> -> vector<256x256xf32>
      %c0_15 = arith.constant 0 : index
      %c0_16 = arith.constant 0 : index
      %19 = vector.load %arg5[%c0_15, %c0_16] : memref<256x1xf32, #tpu.memory_space<vmem>>, vector<256x1xf32>
      %20 = vector.broadcast %19 : vector<256x1xf32> to vector<256x256xf32>
      %21 = arith.addf %18, %20 : vector<256x256xf32>
      %22 = tpu.transpose %21, [1, 0] : vector<256x256xf32> -> vector<256x256xf32>
      %23 = arith.index_cast %1 : i32 to index
      %c0_17 = arith.constant 0 : index
      %24 = vector.load %arg9[%23, %c0_17] : memref<256x256xf32, #tpu.memory_space<vmem>>, vector<256x256xf32>
      tpu.vector_store %arg9[%23, %c0_17], %22 {strides = array<i32>} : memref<256x256xf32, #tpu.memory_space<vmem>>, vector<256x256xf32>,
    } else {
    }
    %c0_i32_1 = arith.constant 0 : i32
    %5 = arith.cmpi eq, %arg2, %c0_i32_1 : i32
    %6 = arith.extui %5 : i1 to i32
    %c0_i32_2 = arith.constant 0 : i32
    %7 = arith.cmpi ne, %6, %c0_i32_2 : i32
    scf.if %7 {
      %c0_9 = arith.constant 0 : index
      %c0_10 = arith.constant 0 : index
      %15 = vector.load %arg7[%c0_9, %c0_10] : memref<256x1xf32, #tpu.memory_space<vmem>>, vector<256x1xf32>
      %16 = vector.shape_cast %15 : vector<256x1xf32> to vector<256x1xf32>
      %17 = vector.broadcast %16 : vector<256x1xf32> to vector<256x256xf32>
      %c0_11 = arith.constant 0 : index
      %c0_12 = arith.constant 0 : index
      %18 = vector.load %arg8[%c0_11, %c0_12] : memref<256x256xf32, #tpu.memory_space<vmem>>, vector<256x256xf32>
      tpu.vector_store %arg8[%c0_11, %c0_12], %17 {strides = array<i32>} : memref<256x256xf32, #tpu.memory_space<vmem>>, vector<256x256xf32>,
    } else {
    }
    %c0 = arith.constant 0 : index
    %c0_3 = arith.constant 0 : index
    %8 = vector.load %arg8[%c0, %c0_3] : memref<256x256xf32, #tpu.memory_space<vmem>>, vector<256x256xf32>
    %c0_4 = arith.constant 0 : index
    %c0_5 = arith.constant 0 : index
    %9 = vector.load %arg6[%c0_4, %c0_5] : memref<256x256xf32, #tpu.memory_space<vmem>>, vector<256x256xf32>
    %10 = arith.index_cast %1 : i32 to index
    %c0_6 = arith.constant 0 : index
    %11 = vector.load %arg9[%10, %c0_6] : memref<256x256xf32, #tpu.memory_space<vmem>>, vector<256x256xf32>
    %cst = arith.constant dense<0.000000e+00> : vector<256x256xf32>
    %12 = tpu.matmul %9, %11, %cst {dimension_numbers = #tpu.dot_dimension_numbers<[1], [0], [0], [1], [0, 0, 1, 1], [], []>} : vector<256x256xf32>, vector<256x256xf32>, vector<256x256xf32> -> vector<256x256xf32>
    %13 = arith.addf %8, %12 : vector<256x256xf32>
    %c0_7 = arith.constant 0 : index
    %c0_8 = arith.constant 0 : index
    %14 = vector.load %arg8[%c0_7, %c0_8] : memref<256x256xf32, #tpu.memory_space<vmem>>, vector<256x256xf32>
    tpu.vector_store %arg8[%c0_7, %c0_8], %13 {strides = array<i32>} : memref<256x256xf32, #tpu.memory_space<vmem>>, vector<256x256xf32>,
    return
  }
  func.func @transform_0(%arg0: i32, %arg1: i32, %arg2: i32) -> (i32, i32, i32) {
    %c0_i32 = arith.constant 0 : i32
    %0 = arith.cmpi eq, %arg1, %c0_i32 : i32
    %c0_i32_0 = arith.constant 0 : i32
    %1 = arith.select %0, %arg2, %c0_i32_0 : i32
    %c0_i32_1 = arith.constant 0 : i32
    %c0_i32_2 = arith.constant 0 : i32
    %c0_i32_3 = arith.constant 0 : i32
    return %c0_i32_1, %c0_i32_2, %1 : i32, i32, i32
  }
  func.func @transform_1(%arg0: i32, %arg1: i32, %arg2: i32) -> (i32, i32) {
    %c0_i32 = arith.constant 0 : i32
    %c0_i32_0 = arith.constant 0 : i32
    return %arg0, %c0_i32 : i32, i32
  }
  func.func @transform_2(%arg0: i32, %arg1: i32, %arg2: i32) -> (i32, i32) {
    %c0_i32 = arith.constant 0 : i32
    %c0_i32_0 = arith.constant 0 : i32
    return %arg0, %c0_i32 : i32, i32
  }
  func.func @transform_3(%arg0: i32, %arg1: i32, %arg2: i32) -> (i32, i32) {
    %c0_i32 = arith.constant 0 : i32
    return %arg1, %arg2 : i32, i32
  }
  func.func @transform_4(%arg0: i32, %arg1: i32, %arg2: i32) -> (i32, i32) {
    %c0_i32 = arith.constant 0 : i32
    %c0_i32_0 = arith.constant 0 : i32
    return %arg1, %c0_i32 : i32, i32
  }
  func.func @transform_5(%arg0: i32, %arg1: i32, %arg2: i32) -> (i32, i32) {
    %c0_i32 = arith.constant 0 : i32
    return %arg1, %arg0 : i32, i32
  }
}

</mosaic_0001>

<llo_original>
// kernel: tpu_custom_call.1
$region0: #{tpu_custom_call.1}
  #allocation0 [shape = 'u32[]', space=smem, size = 0x4, offset = 0x4, fixed_abs, tag = 'smem constant byte address 0x4 - core index']
  #allocation1 [shape = 'u32[144,128]{1,0:T(1,128)}', space=vmem, size = 0x12000, scoped, tag = 'internal scratch']
  #allocation2 [shape = 'f32[256,256]{1,0:T(8,128)}', space=vmem, size = 0x40000, scoped, tag = 'scratch operand']
  %s0 = inlined_call_operand.vmem [shape: f32[1,128,256], index: 0, kind: input, shape index: {}]
  %s1 = inlined_call_operand.vmem [shape: f32[512,128], index: 1, kind: input, shape index: {}]
  %s2 = inlined_call_operand.vmem [shape: f32[512,1], index: 2, kind: input, shape index: {}]
  %s3 = inlined_call_operand.hbm [shape: f32[256,256], index: 3, kind: input, shape index: {}]
  %s4 = inlined_call_operand.vmem [shape: f32[256,1], index: 4, kind: input, shape index: {}]
  %s5 = inlined_call_operand.hbm [shape: f32[256,512], index: 5, kind: output, shape index: {}]
  %s6 = sld [smem:[#allocation0]]
  $region65: #{tpu_custom_call.1} parent=0
    _
  %s8 = ssub.s32 1, %s6
  %s9 = scalar_select 0, %s8, %s6
  $region1: #{tpu_custom_call.1} parent=0
    #allocation3 [shape = 'u8[262144]{0}', space=vmem, size = 0x40000, scoped, tag = 'input window, operand 3, single buffered']
    #allocation4 [shape = 's32[2]{0}', space=sflag, size = 0x8, scoped, tag = 'scoped memory for tpu_custom_call.1']
    #allocation5 [shape = 's32[2]{0}', space=sflag, size = 0x8, scoped, tag = 'scoped memory for tpu_custom_call.1']
    #allocation6 [shape = 'u8[524288]{0}', space=vmem, size = 0x80000, scoped, tag = 'output window, operand 0']
    %10 = vsyncpa [#allocation4], 0
    %11 = vsyncpa [#allocation5], 0
    %s12 = scalar_lea.sflag [#allocation5], 1
    %13 = vsyncpa %s12, 0
    loop: start=0, step=1, limit=4
    $region2: #{tpu_custom_call.1} parent=1 // loop_pre_header
      _
    $region3: #{tpu_custom_call.1} parent=1 // loop_header
      %s15 = sphi 0, %s19
      %p16 = scmp.ge.s32.totalorder %s15, 4
      %s22 = sphi 0, %s41
      %s23 = sphi 0, %s37
      %s24 = sphi 0, %s33
      %s25 = sphi 0, %s22
      %s26 = sphi 0, %s23
      %s27 = sphi 0, %s24
      %s28 = sphi 0, %s25
      %s29 = sphi 0, %s26
      %s30 = sphi 0, %s27
      %s48 = sphi 0, %s50
      %s51 = sphi 0, %s48
      %s52 = sphi 0, %s51
      %s68 = sphi 0, %s52
      %s74 = sphi 0, %s76
      %s77 = sphi 0, %s74
      %s78 = sphi 0, %s77
      %s94 = sphi 0, %s78
      %s100 = sphi 0, %s102
      %s103 = sphi 0, %s100
      %s104 = sphi 0, %s103
      %s120 = sphi 0, %s104
      %s128 = sphi 0, %s130
      %s131 = sphi 0, %s128
      %s132 = sphi 0, %s131
      %s148 = sphi 0, %s132
      %s154 = sphi 0, %s156
      %s157 = sphi 0, %s154
      %s158 = sphi 0, %s157
      %s174 = sphi 0, %s158
      %s182 = sphi 0, %s184
      %s185 = sphi 0, %s182
      %s186 = sphi 0, %s185
      %s202 = sphi 0, %s186
    $region4: #{tpu_custom_call.1} parent=1 // loop_header_branch
      %18 = sbr.rel (%p16) target = $region8
    $region5: #{tpu_custom_call.1} parent=1 // loop_body
      %s20 = ssub.s32 %s15, 1
      %s21 = ssub.s32 %s15, 2
      %s31 = sadd.s32 1, %s24
      %p32 = scmp.ge.s32.totalorder %s31, 1
      %s33 = scalar_select %p32, 0, %s31
      %s34 = sadd.s32 1, %s23
      %s35 = scalar_select %p32, %s34, %s23
      %p36 = scmp.ge.s32.totalorder %s35, 1
      %s37 = scalar_select %p36, 0, %s35
      %s38 = sadd.s32 1, %s22
      %s39 = scalar_select %p36, %s38, %s22
      %p40 = scmp.ge.s32.totalorder %s39, 2
      %s41 = scalar_select %p40, 0, %s39
      %p42 = scmp.eq.s32.totalorder %s23, 0
      %s43 = scalar_select %p42, %s24, 0
      %p44 = scmp.eq.s32.totalorder %s37, 0
      %s45 = scalar_select %p44, %s33, 0
      %s46 = ssub.s32 %s43, %s45
      %p47 = scmp.eq.s32.totalorder %s46, 0
      %s49 = sadd.s32 %s48, 1
      %s50 = scalar_select %p47, %s48, %s49
      %p53 = pneg %p47
      %p54 = scmp.eq.s32.totalorder %s15, 1
      %p55 = por %p53, %p54
      %p56 = scmp.ne.s32.totalorder %s48, %s51
      %p57 = scmp.eq.s32.totalorder %s15, 0
      %p58 = por %p56, %p57
      %p59 = scmp.ne.s32.totalorder %s48, %s51
      %p60 = scmp.eq.s32.totalorder %s20, 1
      %p61 = por %p59, %p60
      %p62 = scmp.ne.s32.totalorder %s51, %s52
      %p63 = scmp.eq.s32.totalorder %s20, 0
      %p64 = por %p62, %p63
      %p65 = scmp.ne.s32.totalorder %s51, %s52
      %p66 = scmp.eq.s32.totalorder %s21, 1
      %p67 = por %p65, %p66
      %p69 = scmp.ne.s32.totalorder %s52, %s68
      %p70 = scmp.eq.s32.totalorder %s21, 0
      %p71 = por %p69, %p70
      %s72 = ssub.s32 %s22, %s41
      %p73 = scmp.eq.s32.totalorder %s72, 0
      %s75 = sadd.s32 %s74, 1
      %s76 = scalar_select %p73, %s74, %s75
      %p79 = pneg %p73
      %p80 = scmp.eq.s32.totalorder %s15, 1
      %p81 = por %p79, %p80
      %p82 = scmp.ne.s32.totalorder %s74, %s77
      %p83 = scmp.eq.s32.totalorder %s15, 0
      %p84 = por %p82, %p83
      %p85 = scmp.ne.s32.totalorder %s74, %s77
      %p86 = scmp.eq.s32.totalorder %s20, 1
      %p87 = por %p85, %p86
      %p88 = scmp.ne.s32.totalorder %s77, %s78
      %p89 = scmp.eq.s32.totalorder %s20, 0
      %p90 = por %p88, %p89
      %p91 = scmp.ne.s32.totalorder %s77, %s78
      %p92 = scmp.eq.s32.totalorder %s21, 1
      %p93 = por %p91, %p92
      %p95 = scmp.ne.s32.totalorder %s78, %s94
      %p96 = scmp.eq.s32.totalorder %s21, 0
      %p97 = por %p95, %p96
      %s98 = ssub.s32 %s22, %s41
      %p99 = scmp.eq.s32.totalorder %s98, 0
      %s101 = sadd.s32 %s100, 1
      %s102 = scalar_select %p99, %s100, %s101
      %p105 = pneg %p99
      %p106 = scmp.eq.s32.totalorder %s15, 1
      %p107 = por %p105, %p106
      %p108 = scmp.ne.s32.totalorder %s100, %s103
      %p109 = scmp.eq.s32.totalorder %s15, 0
      %p110 = por %p108, %p109
      %p111 = scmp.ne.s32.totalorder %s100, %s103
      %p112 = scmp.eq.s32.totalorder %s20, 1
      %p113 = por %p111, %p112
      %p114 = scmp.ne.s32.totalorder %s103, %s104
      %p115 = scmp.eq.s32.totalorder %s20, 0
      %p116 = por %p114, %p115
      %p117 = scmp.ne.s32.totalorder %s103, %s104
      %p118 = scmp.eq.s32.totalorder %s21, 1
      %p119 = por %p117, %p118
      %p121 = scmp.ne.s32.totalorder %s104, %s120
      %p122 = scmp.eq.s32.totalorder %s21, 0
      %p123 = por %p121, %p122
      %s124 = ssub.s32 %s23, %s37
      %s125 = ssub.s32 %s24, %s33
      %s126 = sor.u32 %s124, %s125
      %p127 = scmp.eq.s32.totalorder %s126, 0
      %s129 = sadd.s32 %s128, 1
      %s130 = scalar_select %p127, %s128, %s129
      %p133 = pneg %p127
      %p134 = scmp.eq.s32.totalorder %s15, 1
      %p135 = por %p133, %p134
      %p136 = scmp.ne.s32.totalorder %s128, %s131
      %p137 = scmp.eq.s32.totalorder %s15, 0
      %p138 = por %p136, %p137
      %p139 = scmp.ne.s32.totalorder %s128, %s131
      %p140 = scmp.eq.s32.totalorder %s20, 1
      %p141 = por %p139, %p140
      %p142 = scmp.ne.s32.totalorder %s131, %s132
      %p143 = scmp.eq.s32.totalorder %s20, 0
      %p144 = por %p142, %p143
      %p145 = scmp.ne.s32.totalorder %s131, %s132
      %p146 = scmp.eq.s32.totalorder %s21, 1
      %p147 = por %p145, %p146
      %p149 = scmp.ne.s32.totalorder %s132, %s148
      %p150 = scmp.eq.s32.totalorder %s21, 0
      %p151 = por %p149, %p150
      %s152 = ssub.s32 %s23, %s37
      %p153 = scmp.eq.s32.totalorder %s152, 0
      %s155 = sadd.s32 %s154, 1
      %s156 = scalar_select %p153, %s154, %s155
      %p159 = pneg %p153
      %p160 = scmp.eq.s32.totalorder %s15, 1
      %p161 = por %p159, %p160
      %p162 = scmp.ne.s32.totalorder %s154, %s157
      %p163 = scmp.eq.s32.totalorder %s15, 0
      %p164 = por %p162, %p163
      %p165 = scmp.ne.s32.totalorder %s154, %s157
      %p166 = scmp.eq.s32.totalorder %s20, 1
      %p167 = por %p165, %p166
      %p168 = scmp.ne.s32.totalorder %s157, %s158
      %p169 = scmp.eq.s32.totalorder %s20, 0
      %p170 = por %p168, %p169
      %p171 = scmp.ne.s32.totalorder %s157, %s158
      %p172 = scmp.eq.s32.totalorder %s21, 1
      %p173 = por %p171, %p172
      %p175 = scmp.ne.s32.totalorder %s158, %s174
      %p176 = scmp.eq.s32.totalorder %s21, 0
      %p177 = por %p175, %p176
      %s178 = ssub.s32 %s23, %s37
      %s179 = ssub.s32 %s22, %s41
      %s180 = sor.u32 %s178, %s179
      %p181 = scmp.eq.s32.totalorder %s180, 0
      %s183 = sadd.s32 %s182, 1
      %s184 = scalar_select %p181, %s182, %s183
      %p187 = pneg %p181
      %p188 = scmp.eq.s32.totalorder %s15, 1
      %p189 = por %p187, %p188
      %p190 = scmp.ne.s32.totalorder %s182, %s185
      %p191 = scmp.eq.s32.totalorder %s15, 0
      %p192 = por %p190, %p191
      %p193 = scmp.ne.s32.totalorder %s182, %s185
      %p194 = scmp.eq.s32.totalorder %s20, 1
      %p195 = por %p193, %p194
      %p196 = scmp.ne.s32.totalorder %s185, %s186
      %p197 = scmp.eq.s32.totalorder %s20, 0
      %p198 = por %p196, %p197
      %p199 = scmp.ne.s32.totalorder %s185, %s186
      %p200 = scmp.eq.s32.totalorder %s21, 1
      %p201 = por %p199, %p200
      %p203 = scmp.ne.s32.totalorder %s186, %s202
      %p204 = scmp.eq.s32.totalorder %s21, 0
      %p205 = por %p203, %p204
      %p206 = scmp.le.s32.totalorder 1, %s15
      %p207 = scmp.lt.s32.totalorder %s15, 3
      %p208 = pnand %p206, %p207
      %p209 = pneg %p208
      // Predicated region
      $region9: #{tpu_custom_call.1} parent=5 // pred_check
        _
      $region10: #{tpu_custom_call.1} parent=5 // pred_check_branch
        %211 = sbr.rel (%p208) target = $region12
      $region11: #{tpu_custom_call.1} parent=5 // pred_region
        %s212 = ssub.s32 %s15, 1
        // Predicated region
        $region13: #{tpu_custom_call.1} parent=11 // pred_check
          %p213 = pneg %p64
        $region14: #{tpu_custom_call.1} parent=11 // pred_check_branch
          %215 = sbr.rel (%p213) target = $region16
        $region15: #{tpu_custom_call.1} parent=11 // pred_region
          %p216 = scmp.eq.s32.totalorder %s26, 0
          %s217 = scalar_select %p216, %s27, 0
          %s218 = smul.u32 2, %s217
          %p219 = scmp.lt.s32.totalorder %s218, 1
          %s220 = scalar_select %p219, %s218, 1
          %s221 = smul.addr %s220, 8
          %s222 = scalar_lea.vmem %s0, %s221
          %p223 = scmp.eq.s32.totalorder %s26, 0
          %s224 = scalar_select %p223, %s27, 0
          %s225 = smul.u32 2, %s224
        $region16: #{tpu_custom_call.1} parent=11 // pred_fallthru
          _
        // Predicated region
        $region17: #{tpu_custom_call.1} parent=11 // pred_check
          %p226 = pneg %p144
        $region18: #{tpu_custom_call.1} parent=11 // pred_check_branch
          %228 = sbr.rel (%p226) target = $region20
        $region19: #{tpu_custom_call.1} parent=11 // pred_region
          %s229 = smul.u32 32, %s26
          %s230 = smul.u32 2, %s27
          %s232 = ssub.s32 8192, 8192
          %233 = vsyncadd [#allocation4], %s232
          %s234 = smul.addr %s229, 2
          %s235 = sadd.s32 %s230, %s234
          %s236 = smul.addr %s235, 128
          %s237 = scalar_lea.hbm %s3, %s236
          %s238 = sshll.u32 [#allocation3], 4
          %s239 = int_to_ptr.vmem [resolvable:$true] %s238
          %244 = dma.hbm_to_vmem [thread:$0]  %s237, 8192, %s239, [#allocation4], 256, 256, 16
        $region20: #{tpu_custom_call.1} parent=11 // pred_fallthru
          _
        // Predicated region
        $region21: #{tpu_custom_call.1} parent=11 // pred_check
          %p245 = pneg %p170
        $region22: #{tpu_custom_call.1} parent=11 // pred_check_branch
          %247 = sbr.rel (%p245) target = $region24
        $region23: #{tpu_custom_call.1} parent=11 // pred_region
          %s248 = smul.u32 32, %s26
          %p249 = scmp.lt.s32.totalorder %s248, 31
          %s250 = scalar_select %p249, %s248, 31
          %s251 = smul.addr %s250, 8
          %s252 = scalar_lea.vmem %s4, %s251
          %s253 = smul.u32 32, %s26
        $region24: #{tpu_custom_call.1} parent=11 // pred_fallthru
          _
      $region12: #{tpu_custom_call.1} parent=5 // pred_fallthru
        _
      %p254 = scmp.lt.s32.totalorder %s15, 2
      // Predicated region
      $region25: #{tpu_custom_call.1} parent=5 // pred_check
        %p255 = pneg %p254
      $region26: #{tpu_custom_call.1} parent=5 // pred_check_branch
        %257 = sbr.rel (%p255) target = $region28
      $region27: #{tpu_custom_call.1} parent=5 // pred_region
        // Predicated region
        $region29: #{tpu_custom_call.1} parent=27 // pred_check
          %p258 = pneg %p84
        $region30: #{tpu_custom_call.1} parent=27 // pred_check_branch
          %260 = sbr.rel (%p258) target = $region32
        $region31: #{tpu_custom_call.1} parent=27 // pred_region
          %s261 = smul.u32 32, %s22
          %p262 = scmp.lt.s32.totalorder %s261, 63
          %s263 = scalar_select %p262, %s261, 63
          %s264 = smul.addr %s263, 8
          %s265 = scalar_lea.vmem %s1, %s264
          %s266 = smul.u32 32, %s22
        $region32: #{tpu_custom_call.1} parent=27 // pred_fallthru
          _
        // Predicated region
        $region33: #{tpu_custom_call.1} parent=27 // pred_check
          %p267 = pneg %p110
        $region34: #{tpu_custom_call.1} parent=27 // pred_check_branch
          %269 = sbr.rel (%p267) target = $region36
        $region35: #{tpu_custom_call.1} parent=27 // pred_region
          %s270 = smul.u32 32, %s22
          %p271 = scmp.lt.s32.totalorder %s270, 63
          %s272 = scalar_select %p271, %s270, 63
          %s273 = smul.addr %s272, 8
          %s274 = scalar_lea.vmem %s2, %s273
          %s275 = smul.u32 32, %s22
        $region36: #{tpu_custom_call.1} parent=27 // pred_fallthru
          _
      $region28: #{tpu_custom_call.1} parent=5 // pred_fallthru
        _
      %p276 = scmp.le.s32.totalorder 1, %s15
      %p277 = scmp.lt.s32.totalorder %s15, 3
      %p278 = pnand %p276, %p277
      %p279 = pneg %p278
      // Predicated region
      $region37: #{tpu_custom_call.1} parent=5 // pred_check
        _
      $region38: #{tpu_custom_call.1} parent=5 // pred_check_branch
        %281 = sbr.rel (%p278) target = $region40
      $region39: #{tpu_custom_call.1} parent=5 // pred_region
        %s282 = ssub.s32 %s15, 1
        // Predicated region
        $region41: #{tpu_custom_call.1} parent=39 // pred_check
          %p283 = pneg %p144
        $region42: #{tpu_custom_call.1} parent=39 // pred_check_branch
          %285 = sbr.rel (%p283) target = $region44
        $region43: #{tpu_custom_call.1} parent=39 // pred_region
          %286 = dma.done [#allocation4], 8192
        $region44: #{tpu_custom_call.1} parent=39 // pred_fallthru
          _
        %p287 = scmp.eq.s32.totalorder %s26, 0
        %s288 = scalar_select %p287, %s27, 0
        %s289 = smul.u32 2, %s288
        %p290 = scmp.lt.s32.totalorder %s289, 1
        %s291 = scalar_select %p290, %s289, 1
        %s292 = smul.addr %s291, 8
        %s293 = scalar_lea.vmem %s0, %s292
        %p294 = pneg %p64
        %p295 = pneg %p61
        %s296 = smul.u32 32, %s25
        %p297 = scmp.lt.s32.totalorder %s296, 63
        %s298 = scalar_select %p297, %s296, 63
        %s299 = smul.addr %s298, 8
        %s300 = scalar_lea.vmem %s1, %s299
        %p301 = pneg %p90
        %p302 = pneg %p87
        %s303 = smul.u32 32, %s25
        %p304 = scmp.lt.s32.totalorder %s303, 63
        %s305 = scalar_select %p304, %s303, 63
        %s306 = smul.addr %s305, 8
        %s307 = scalar_lea.vmem %s2, %s306
        %p308 = pneg %p116
        %p309 = pneg %p113
        %p310 = pneg %p144
        %p311 = pneg %p141
        %s312 = smul.u32 32, %s26
        %p313 = scmp.lt.s32.totalorder %s312, 31
        %s314 = scalar_select %p313, %s312, 31
        %s315 = smul.addr %s314, 8
        %s316 = scalar_lea.vmem %s4, %s315
        %p317 = pneg %p170
        %p318 = pneg %p167
        %p319 = pneg %p198
        %p320 = pneg %p195
        %s321 = sand.u32 %s185, 1
        %s322 = scalar_lea.sflag [#allocation5], %s321
        %s323 = sand.u32 %s185, 1
        %s324 = smul.addr %s323, 512
        %s325 = scalar_lea.vmem [#allocation6], %s324
        %p326 = scmp.eq.s32.totalorder %s26, 0
        %s327 = scalar_select %p326, %s27, 0
        %s328 = smul.u32 2, %s327
        %p329 = scmp.lt.s32.totalorder %s328, 1
        %s330 = scalar_select %p329, %s328, 1
        %s331 = smul.addr %s330, 8
        %s332 = scalar_lea.vmem %s0, %s331
        %p333 = scmp.eq.s32.totalorder %s26, 0
        %s334 = scalar_select %p333, %s27, 0
        %s335 = smul.u32 2, %s334
        %s336 = smul.u32 32, %s25
        %p337 = scmp.lt.s32.totalorder %s336, 63
        %s338 = scalar_select %p337, %s336, 63
        %s339 = smul.addr %s338, 8
        %s340 = scalar_lea.vmem %s1, %s339
        %s341 = smul.u32 32, %s25
        %s342 = smul.u32 32, %s25
        %p343 = scmp.lt.s32.totalorder %s342, 63
        %s344 = scalar_select %p343, %s342, 63
        %s345 = smul.addr %s344, 8
        %s346 = scalar_lea.vmem %s2, %s345
        %s347 = smul.u32 32, %s25
        %s348 = smul.u32 32, %s26
        %s349 = smul.u32 2, %s27
        %s350 = smul.u32 32, %s26
        %p351 = scmp.lt.s32.totalorder %s350, 31
        %s352 = scalar_select %p351, %s350, 31
        %s353 = smul.addr %s352, 8
        %s354 = scalar_lea.vmem %s4, %s353
        %s355 = smul.u32 32, %s26
        %s356 = smul.u32 32, %s26
        %s357 = smul.u32 2, %s25
        %s358 = smul.u32 %s27, 256
        %p359 = scmp.eq.s32.totalorder %s26, 0
        // Predicated region
        $region45: #{tpu_custom_call.1} parent=39 // pred_check
          %p360 = pneg %p359
        $region46: #{tpu_custom_call.1} parent=39 // pred_check_branch
          %362 = sbr.rel (%p360) target = $region48
        $region47: #{tpu_custom_call.1} parent=39 // pred_region
          %v363 = vld [vmem:[%s340] sm:$0xff]
          %v364 = vld [vmem:[%s340 + $0x8] sm:$0xff]
          %v365 = vld [vmem:[%s340 + $0x10] sm:$0xff]
          %v366 = vld [vmem:[%s340 + $0x18] sm:$0xff]
          %v367 = vld [vmem:[%s340 + $0x20] sm:$0xff]
          %v368 = vld [vmem:[%s340 + $0x28] sm:$0xff]
          %v369 = vld [vmem:[%s340 + $0x30] sm:$0xff]
          %v370 = vld [vmem:[%s340 + $0x38] sm:$0xff]
          %v371 = vld [vmem:[%s340 + $0x40] sm:$0xff]
          %v372 = vld [vmem:[%s340 + $0x48] sm:$0xff]
          %v373 = vld [vmem:[%s340 + $0x50] sm:$0xff]
          %v374 = vld [vmem:[%s340 + $0x58] sm:$0xff]
          %v375 = vld [vmem:[%s340 + $0x60] sm:$0xff]
          %v376 = vld [vmem:[%s340 + $0x68] sm:$0xff]
          %v377 = vld [vmem:[%s340 + $0x70] sm:$0xff]
          %v378 = vld [vmem:[%s340 + $0x78] sm:$0xff]
          %v379 = vld [vmem:[%s340 + $0x80] sm:$0xff]
          %v380 = vld [vmem:[%s340 + $0x88] sm:$0xff]
          %v381 = vld [vmem:[%s340 + $0x90] sm:$0xff]
          %v382 = vld [vmem:[%s340 + $0x98] sm:$0xff]
          %v383 = vld [vmem:[%s340 + $0xa0] sm:$0xff]
          %v384 = vld [vmem:[%s340 + $0xa8] sm:$0xff]
          %v385 = vld [vmem:[%s340 + $0xb0] sm:$0xff]
          %v386 = vld [vmem:[%s340 + $0xb8] sm:$0xff]
          %v387 = vld [vmem:[%s340 + $0xc0] sm:$0xff]
          %v388 = vld [vmem:[%s340 + $0xc8] sm:$0xff]
          %v389 = vld [vmem:[%s340 + $0xd0] sm:$0xff]
          %v390 = vld [vmem:[%s340 + $0xd8] sm:$0xff]
          %v391 = vld [vmem:[%s340 + $0xe0] sm:$0xff]
          %v392 = vld [vmem:[%s340 + $0xe8] sm:$0xff]
          %v393 = vld [vmem:[%s340 + $0xf0] sm:$0xff]
          %v394 = vld [vmem:[%s340 + $0xf8] sm:$0xff]
          %v395 = vld [vmem:[%s332] sm:$0xff]
          %v396 = vld [vmem:[%s332 + $0x8] sm:$0xff]
          %v397 = vld [vmem:[%s332 + $0x10] sm:$0xff]
          %v398 = vld [vmem:[%s332 + $0x18] sm:$0xff]
          %v399 = vld [vmem:[%s332 + $0x20] sm:$0xff]
          %v400 = vld [vmem:[%s332 + $0x28] sm:$0xff]
          %v401 = vld [vmem:[%s332 + $0x30] sm:$0xff]
          %v402 = vld [vmem:[%s332 + $0x38] sm:$0xff]
          %v403 = vld [vmem:[%s332 + $0x40] sm:$0xff]
          %v404 = vld [vmem:[%s332 + $0x48] sm:$0xff]
          %v405 = vld [vmem:[%s332 + $0x50] sm:$0xff]
          %v406 = vld [vmem:[%s332 + $0x58] sm:$0xff]
          %v407 = vld [vmem:[%s332 + $0x60] sm:$0xff]
          %v408 = vld [vmem:[%s332 + $0x68] sm:$0xff]
          %v409 = vld [vmem:[%s332 + $0x70] sm:$0xff]
          %v410 = vld [vmem:[%s332 + $0x78] sm:$0xff]
          %v411 = vld [vmem:[%s332 + $0x80] sm:$0xff]
          %v412 = vld [vmem:[%s332 + $0x88] sm:$0xff]
          %v413 = vld [vmem:[%s332 + $0x90] sm:$0xff]
          %v414 = vld [vmem:[%s332 + $0x98] sm:$0xff]
          %v415 = vld [vmem:[%s332 + $0xa0] sm:$0xff]
          %v416 = vld [vmem:[%s332 + $0xa8] sm:$0xff]
          %v417 = vld [vmem:[%s332 + $0xb0] sm:$0xff]
          %v418 = vld [vmem:[%s332 + $0xb8] sm:$0xff]
          %v419 = vld [vmem:[%s332 + $0xc0] sm:$0xff]
          %v420 = vld [vmem:[%s332 + $0xc8] sm:$0xff]
          %v421 = vld [vmem:[%s332 + $0xd0] sm:$0xff]
          %v422 = vld [vmem:[%s332 + $0xd8] sm:$0xff]
          %v423 = vld [vmem:[%s332 + $0xe0] sm:$0xff]
          %v424 = vld [vmem:[%s332 + $0xe8] sm:$0xff]
          %v425 = vld [vmem:[%s332 + $0xf0] sm:$0xff]
          %v426 = vld [vmem:[%s332 + $0xf8] sm:$0xff]
          %v427 = vld [vmem:[%s346] sm:$0xff]
          %v428 = vld [vmem:[%s346 + $0x8] sm:$0xff]
          %v429 = vld [vmem:[%s346 + $0x10] sm:$0xff]
          %v430 = vld [vmem:[%s346 + $0x18] sm:$0xff]
          %v431 = vld [vmem:[%s346 + $0x20] sm:$0xff]
          %v432 = vld [vmem:[%s346 + $0x28] sm:$0xff]
          %v433 = vld [vmem:[%s346 + $0x30] sm:$0xff]
          %v434 = vld [vmem:[%s346 + $0x38] sm:$0xff]
          %v435 = vld [vmem:[%s346 + $0x40] sm:$0xff]
          %v436 = vld [vmem:[%s346 + $0x48] sm:$0xff]
          %v437 = vld [vmem:[%s346 + $0x50] sm:$0xff]
          %v438 = vld [vmem:[%s346 + $0x58] sm:$0xff]
          %v439 = vld [vmem:[%s346 + $0x60] sm:$0xff]
          %v440 = vld [vmem:[%s346 + $0x68] sm:$0xff]
          %v441 = vld [vmem:[%s346 + $0x70] sm:$0xff]
          %v442 = vld [vmem:[%s346 + $0x78] sm:$0xff]
          %v443 = vld [vmem:[%s346 + $0x80] sm:$0xff]
          %v444 = vld [vmem:[%s346 + $0x88] sm:$0xff]
          %v445 = vld [vmem:[%s346 + $0x90] sm:$0xff]
          %v446 = vld [vmem:[%s346 + $0x98] sm:$0xff]
          %v447 = vld [vmem:[%s346 + $0xa0] sm:$0xff]
          %v448 = vld [vmem:[%s346 + $0xa8] sm:$0xff]
          %v449 = vld [vmem:[%s346 + $0xb0] sm:$0xff]
          %v450 = vld [vmem:[%s346 + $0xb8] sm:$0xff]
          %v451 = vld [vmem:[%s346 + $0xc0] sm:$0xff]
          %v452 = vld [vmem:[%s346 + $0xc8] sm:$0xff]
          %v453 = vld [vmem:[%s346 + $0xd0] sm:$0xff]
          %v454 = vld [vmem:[%s346 + $0xd8] sm:$0xff]
          %v455 = vld [vmem:[%s346 + $0xe0] sm:$0xff]
          %v456 = vld [vmem:[%s346 + $0xe8] sm:$0xff]
          %v457 = vld [vmem:[%s346 + $0xf0] sm:$0xff]
          %v458 = vld [vmem:[%s346 + $0xf8] sm:$0xff]
          %460 = vset.pattern.permute.xlu0 0
          %461 = vperm.xlu0 %460, %v427
          %v462 = vpop.permute.xlu0 %461
          %465 = vset.pattern.permute.xlu0 0
          %466 = vperm.xlu0 %465, %v428
          %v467 = vpop.permute.xlu0 %466
          %470 = vset.pattern.permute.xlu0 0
          %471 = vperm.xlu0 %470, %v429
          %v472 = vpop.permute.xlu0 %471
          %475 = vset.pattern.permute.xlu0 0
          %476 = vperm.xlu0 %475, %v430
          %v477 = vpop.permute.xlu0 %476
          %480 = vset.pattern.permute.xlu0 0
          %481 = vperm.xlu0 %480, %v431
          %v482 = vpop.permute.xlu0 %481
          %485 = vset.pattern.permute.xlu0 0
          %486 = vperm.xlu0 %485, %v432
          %v487 = vpop.permute.xlu0 %486
          %490 = vset.pattern.permute.xlu0 0
          %491 = vperm.xlu0 %490, %v433
          %v492 = vpop.permute.xlu0 %491
          %495 = vset.pattern.permute.xlu0 0
          %496 = vperm.xlu0 %495, %v434
          %v497 = vpop.permute.xlu0 %496
          %500 = vset.pattern.permute.xlu0 0
          %501 = vperm.xlu0 %500, %v435
          %v502 = vpop.permute.xlu0 %501
          %505 = vset.pattern.permute.xlu0 0
          %506 = vperm.xlu0 %505, %v436
          %v507 = vpop.permute.xlu0 %506
          %510 = vset.pattern.permute.xlu0 0
          %511 = vperm.xlu0 %510, %v437
          %v512 = vpop.permute.xlu0 %511
          %515 = vset.pattern.permute.xlu0 0
          %516 = vperm.xlu0 %515, %v438
          %v517 = vpop.permute.xlu0 %516
          %520 = vset.pattern.permute.xlu0 0
          %521 = vperm.xlu0 %520, %v439
          %v522 = vpop.permute.xlu0 %521
          %525 = vset.pattern.permute.xlu0 0
          %526 = vperm.xlu0 %525, %v440
          %v527 = vpop.permute.xlu0 %526
          %530 = vset.pattern.permute.xlu0 0
          %531 = vperm.xlu0 %530, %v441
          %v532 = vpop.permute.xlu0 %531
          %535 = vset.pattern.permute.xlu0 0
          %536 = vperm.xlu0 %535, %v442
          %v537 = vpop.permute.xlu0 %536
          %540 = vset.pattern.permute.xlu0 0
          %541 = vperm.xlu0 %540, %v443
          %v542 = vpop.permute.xlu0 %541
          %545 = vset.pattern.permute.xlu0 0
          %546 = vperm.xlu0 %545, %v444
          %v547 = vpop.permute.xlu0 %546
          %550 = vset.pattern.permute.xlu0 0
          %551 = vperm.xlu0 %550, %v445
          %v552 = vpop.permute.xlu0 %551
          %555 = vset.pattern.permute.xlu0 0
          %556 = vperm.xlu0 %555, %v446
          %v557 = vpop.permute.xlu0 %556
          %560 = vset.pattern.permute.xlu0 0
          %561 = vperm.xlu0 %560, %v447
          %v562 = vpop.permute.xlu0 %561
          %565 = vset.pattern.permute.xlu0 0
          %566 = vperm.xlu0 %565, %v448
          %v567 = vpop.permute.xlu0 %566
          %570 = vset.pattern.permute.xlu0 0
          %571 = vperm.xlu0 %570, %v449
          %v572 = vpop.permute.xlu0 %571
          %575 = vset.pattern.permute.xlu0 0
          %576 = vperm.xlu0 %575, %v450
          %v577 = vpop.permute.xlu0 %576
          %580 = vset.pattern.permute.xlu0 0
          %581 = vperm.xlu0 %580, %v451
          %v582 = vpop.permute.xlu0 %581
          %585 = vset.pattern.permute.xlu0 0
          %586 = vperm.xlu0 %585, %v452
          %v587 = vpop.permute.xlu0 %586
          %590 = vset.pattern.permute.xlu0 0
          %591 = vperm.xlu0 %590, %v453
          %v592 = vpop.permute.xlu0 %591
          %595 = vset.pattern.permute.xlu0 0
          %596 = vperm.xlu0 %595, %v454
          %v597 = vpop.permute.xlu0 %596
          %600 = vset.pattern.permute.xlu0 0
          %601 = vperm.xlu0 %600, %v455
          %v602 = vpop.permute.xlu0 %601
          %605 = vset.pattern.permute.xlu0 0
          %606 = vperm.xlu0 %605, %v456
          %v607 = vpop.permute.xlu0 %606
          %610 = vset.pattern.permute.xlu0 0
          %611 = vperm.xlu0 %610, %v457
          %v612 = vpop.permute.xlu0 %611
          %615 = vset.pattern.permute.xlu0 0
          %616 = vperm.xlu0 %615, %v458
          %v617 = vpop.permute.xlu0 %616
          %619 = vmatprep.subr.mxu0 %v426
          %620 = vmatpush1.msra.mxu0 %v425
          %621 = vmatprep.subr.mxu0 %v424
          %622 = vmatpush1.msra.mxu0 %v423
          %623 = vmatprep.subr.mxu0 %v422
          %624 = vmatpush1.msra.mxu0 %v421
          %625 = vmatprep.subr.mxu0 %v420
          %626 = vmatpush1.msra.mxu0 %v419
          %627 = vmatprep.subr.mxu0 %v418
          %628 = vmatpush1.msra.mxu0 %v417
          %629 = vmatprep.subr.mxu0 %v416
          %630 = vmatpush1.msra.mxu0 %v415
          %631 = vmatprep.subr.mxu0 %v414
          %632 = vmatpush1.msra.mxu0 %v413
          %633 = vmatprep.subr.mxu0 %v412
          %634 = vmatpush1.msra.mxu0 %v411
          %635 = vmatprep.subr.mxu0 %v410
          %636 = vmatpush1.msra.mxu0 %v409
          %637 = vmatprep.subr.mxu0 %v408
          %638 = vmatpush1.msra.mxu0 %v407
          %639 = vmatprep.subr.mxu0 %v406
          %640 = vmatpush1.msra.mxu0 %v405
          %641 = vmatprep.subr.mxu0 %v404
          %642 = vmatpush1.msra.mxu0 %v403
          %643 = vmatprep.subr.mxu0 %v402
          %644 = vmatpush1.msra.mxu0 %v401
          %645 = vmatprep.subr.mxu0 %v400
          %646 = vmatpush1.msra.mxu0 %v399
          %647 = vmatprep.subr.mxu0 %v398
          %648 = vmatpush1.msra.mxu0 %v397
          %649 = vmatprep.subr.mxu0 %v396
          %650 = vmatpush1.msra.mxu0 %v395
          %651 = vmatprep.subr.mxu0 0.0
          %652 = vmatpush2.msra.mxu0 0.0
          %653 = vmatprep.subr.mxu0 0.0
          %654 = vmatpush2.msra.mxu0 0.0
          %655 = vmatprep.subr.mxu0 0.0
          %656 = vmatpush2.msra.mxu0 0.0
          %657 = vmatprep.subr.mxu0 0.0
          %658 = vmatpush2.msra.mxu0 0.0
          %659 = vmatprep.subr.mxu0 0.0
          %660 = vmatpush2.msra.mxu0 0.0
          %661 = vmatprep.subr.mxu0 0.0
          %662 = vmatpush2.msra.mxu0 0.0
          %663 = vmatprep.subr.mxu0 0.0
          %664 = vmatpush2.msra.mxu0 0.0
          %665 = vmatprep.subr.mxu0 0.0
          %666 = vmatpush2.msra.mxu0 0.0
          %667 = vmatprep.subr.mxu0 0.0
          %668 = vmatpush2.msra.mxu0 0.0
          %669 = vmatprep.subr.mxu0 0.0
          %670 = vmatpush2.msra.mxu0 0.0
          %671 = vmatprep.subr.mxu0 0.0
          %672 = vmatpush2.msra.mxu0 0.0
          %673 = vmatprep.subr.mxu0 0.0
          %674 = vmatpush2.msra.mxu0 0.0
          %675 = vmatprep.subr.mxu0 0.0
          %676 = vmatpush2.msra.mxu0 0.0
          %677 = vmatprep.subr.mxu0 0.0
          %678 = vmatpush2.msra.mxu0 0.0
          %679 = vmatprep.subr.mxu0 0.0
          %680 = vmatpush2.msra.mxu0 0.0
          %681 = vmatprep.subr.mxu0 0.0
          %682 = vmatpush2.msra.mxu0 0.0
          %683 = vmatprep.mubr.f32.mxu0 0.0
          %684 = vmatmul.mubr.f32.gmra.mxu0 %v363
          %v685 = vpop.f32.mrf.mxu0
          %v686 = vadd.f32 %v462, %v685
          %v687 = vpop.f32.mrf.mxu0
          %v688 = vadd.f32 %v462, %v687
          %689 = vmatprep.mubr.f32.mxu0 0.0
          %690 = vmatmul.mubr.f32.gmra.mxu0 %v364
          %v691 = vpop.f32.mrf.mxu0
          %v692 = vadd.f32 %v467, %v691
          %v693 = vpop.f32.mrf.mxu0
          %v694 = vadd.f32 %v467, %v693
          %695 = vmatprep.mubr.f32.mxu0 0.0
          %696 = vmatmul.mubr.f32.gmra.mxu0 %v365
          %v697 = vpop.f32.mrf.mxu0
          %v698 = vadd.f32 %v472, %v697
          %v699 = vpop.f32.mrf.mxu0
          %v700 = vadd.f32 %v472, %v699
          %701 = vmatprep.mubr.f32.mxu0 0.0
          %702 = vmatmul.mubr.f32.gmra.mxu0 %v366
          %v703 = vpop.f32.mrf.mxu0
          %v704 = vadd.f32 %v477, %v703
          %v705 = vpop.f32.mrf.mxu0
          %v706 = vadd.f32 %v477, %v705
          %707 = vmatprep.mubr.f32.mxu0 0.0
          %708 = vmatmul.mubr.f32.gmra.mxu0 %v367
          %v709 = vpop.f32.mrf.mxu0
          %v710 = vadd.f32 %v482, %v709
          %v711 = vpop.f32.mrf.mxu0
          %v712 = vadd.f32 %v482, %v711
          %713 = vmatprep.mubr.f32.mxu0 0.0
          %714 = vmatmul.mubr.f32.gmra.mxu0 %v368
          %v715 = vpop.f32.mrf.mxu0
          %v716 = vadd.f32 %v487, %v715
          %v717 = vpop.f32.mrf.mxu0
          %v718 = vadd.f32 %v487, %v717
          %719 = vmatprep.mubr.f32.mxu0 0.0
          %720 = vmatmul.mubr.f32.gmra.mxu0 %v369
          %v721 = vpop.f32.mrf.mxu0
          %v722 = vadd.f32 %v492, %v721
          %v723 = vpop.f32.mrf.mxu0
          %v724 = vadd.f32 %v492, %v723
          %725 = vmatprep.mubr.f32.mxu0 0.0
          %726 = vmatmul.mubr.f32.gmra.mxu0 %v370
          %v727 = vpop.f32.mrf.mxu0
          %v728 = vadd.f32 %v497, %v727
          %v729 = vpop.f32.mrf.mxu0
          %v730 = vadd.f32 %v497, %v729
          %731 = vmatprep.mubr.f32.mxu0 0.0
          %732 = vmatmul.mubr.f32.gmra.mxu0 %v371
          %v733 = vpop.f32.mrf.mxu0
          %v734 = vadd.f32 %v502, %v733
          %v735 = vpop.f32.mrf.mxu0
          %v736 = vadd.f32 %v502, %v735
          %737 = vmatprep.mubr.f32.mxu0 0.0
          %738 = vmatmul.mubr.f32.gmra.mxu0 %v372
          %v739 = vpop.f32.mrf.mxu0
          %v740 = vadd.f32 %v507, %v739
          %v741 = vpop.f32.mrf.mxu0
          %v742 = vadd.f32 %v507, %v741
          %743 = vmatprep.mubr.f32.mxu0 0.0
          %744 = vmatmul.mubr.f32.gmra.mxu0 %v373
          %v745 = vpop.f32.mrf.mxu0
          %v746 = vadd.f32 %v512, %v745
          %v747 = vpop.f32.mrf.mxu0
          %v748 = vadd.f32 %v512, %v747
          %749 = vmatprep.mubr.f32.mxu0 0.0
          %750 = vmatmul.mubr.f32.gmra.mxu0 %v374
          %v751 = vpop.f32.mrf.mxu0
          %v752 = vadd.f32 %v517, %v751
          %v753 = vpop.f32.mrf.mxu0
          %v754 = vadd.f32 %v517, %v753
          %755 = vmatprep.mubr.f32.mxu0 0.0
          %756 = vmatmul.mubr.f32.gmra.mxu0 %v375
          %v757 = vpop.f32.mrf.mxu0
          %v758 = vadd.f32 %v522, %v757
          %v759 = vpop.f32.mrf.mxu0
          %v760 = vadd.f32 %v522, %v759
          %761 = vmatprep.mubr.f32.mxu0 0.0
          %762 = vmatmul.mubr.f32.gmra.mxu0 %v376
          %v763 = vpop.f32.mrf.mxu0
          %v764 = vadd.f32 %v527, %v763
          %v765 = vpop.f32.mrf.mxu0
          %v766 = vadd.f32 %v527, %v765
          %767 = vmatprep.mubr.f32.mxu0 0.0
          %768 = vmatmul.mubr.f32.gmra.mxu0 %v377
          %v769 = vpop.f32.mrf.mxu0
          %v770 = vadd.f32 %v532, %v769
          %v771 = vpop.f32.mrf.mxu0
          %v772 = vadd.f32 %v532, %v771
          %773 = vmatprep.mubr.f32.mxu0 0.0
          %774 = vmatmul.mubr.f32.gmra.mxu0 %v378
          %v775 = vpop.f32.mrf.mxu0
          %v776 = vadd.f32 %v537, %v775
          %v777 = vpop.f32.mrf.mxu0
          %v778 = vadd.f32 %v537, %v777
          %779 = vmatprep.mubr.f32.mxu0 0.0
          %780 = vmatmul.mubr.f32.gmra.mxu0 %v379
          %v781 = vpop.f32.mrf.mxu0
          %v782 = vadd.f32 %v542, %v781
          %v783 = vpop.f32.mrf.mxu0
          %v784 = vadd.f32 %v542, %v783
          %785 = vmatprep.mubr.f32.mxu0 0.0
          %786 = vmatmul.mubr.f32.gmra.mxu0 %v380
          %v787 = vpop.f32.mrf.mxu0
          %v788 = vadd.f32 %v547, %v787
          %v789 = vpop.f32.mrf.mxu0
          %v790 = vadd.f32 %v547, %v789
          %791 = vmatprep.mubr.f32.mxu0 0.0
          %792 = vmatmul.mubr.f32.gmra.mxu0 %v381
          %v793 = vpop.f32.mrf.mxu0
          %v794 = vadd.f32 %v552, %v793
          %v795 = vpop.f32.mrf.mxu0
          %v796 = vadd.f32 %v552, %v795
          %797 = vmatprep.mubr.f32.mxu0 0.0
          %798 = vmatmul.mubr.f32.gmra.mxu0 %v382
          %v799 = vpop.f32.mrf.mxu0
          %v800 = vadd.f32 %v557, %v799
          %v801 = vpop.f32.mrf.mxu0
          %v802 = vadd.f32 %v557, %v801
          %803 = vmatprep.mubr.f32.mxu0 0.0
          %804 = vmatmul.mubr.f32.gmra.mxu0 %v383
          %v805 = vpop.f32.mrf.mxu0
          %v806 = vadd.f32 %v562, %v805
          %v807 = vpop.f32.mrf.mxu0
          %v808 = vadd.f32 %v562, %v807
          %809 = vmatprep.mubr.f32.mxu0 0.0
          %810 = vmatmul.mubr.f32.gmra.mxu0 %v384
          %v811 = vpop.f32.mrf.mxu0
          %v812 = vadd.f32 %v567, %v811
          %v813 = vpop.f32.mrf.mxu0
          %v814 = vadd.f32 %v567, %v813
          %815 = vmatprep.mubr.f32.mxu0 0.0
          %816 = vmatmul.mubr.f32.gmra.mxu0 %v385
          %v817 = vpop.f32.mrf.mxu0
          %v818 = vadd.f32 %v572, %v817
          %v819 = vpop.f32.mrf.mxu0
          %v820 = vadd.f32 %v572, %v819
          %821 = vmatprep.mubr.f32.mxu0 0.0
          %822 = vmatmul.mubr.f32.gmra.mxu0 %v386
          %v823 = vpop.f32.mrf.mxu0
          %v824 = vadd.f32 %v577, %v823
          %v825 = vpop.f32.mrf.mxu0
          %v826 = vadd.f32 %v577, %v825
          %827 = vmatprep.mubr.f32.mxu0 0.0
          %828 = vmatmul.mubr.f32.gmra.mxu0 %v387
          %v829 = vpop.f32.mrf.mxu0
          %v830 = vadd.f32 %v582, %v829
          %v831 = vpop.f32.mrf.mxu0
          %v832 = vadd.f32 %v582, %v831
          %833 = vmatprep.mubr.f32.mxu0 0.0
          %834 = vmatmul.mubr.f32.gmra.mxu0 %v388
          %v835 = vpop.f32.mrf.mxu0
          %v836 = vadd.f32 %v587, %v835
          %v837 = vpop.f32.mrf.mxu0
          %v838 = vadd.f32 %v587, %v837
          %839 = vmatprep.mubr.f32.mxu0 0.0
          %840 = vmatmul.mubr.f32.gmra.mxu0 %v389
          %v841 = vpop.f32.mrf.mxu0
          %v842 = vadd.f32 %v592, %v841
          %v843 = vpop.f32.mrf.mxu0
          %v844 = vadd.f32 %v592, %v843
          %845 = vmatprep.mubr.f32.mxu0 0.0
          %846 = vmatmul.mubr.f32.gmra.mxu0 %v390
          %v847 = vpop.f32.mrf.mxu0
          %v848 = vadd.f32 %v597, %v847
          %v849 = vpop.f32.mrf.mxu0
          %v850 = vadd.f32 %v597, %v849
          %851 = vmatprep.mubr.f32.mxu0 0.0
          %852 = vmatmul.mubr.f32.gmra.mxu0 %v391
          %v853 = vpop.f32.mrf.mxu0
          %v854 = vadd.f32 %v602, %v853
          %v855 = vpop.f32.mrf.mxu0
          %v856 = vadd.f32 %v602, %v855
          %857 = vmatprep.mubr.f32.mxu0 0.0
          %858 = vmatmul.mubr.f32.gmra.mxu0 %v392
          %v859 = vpop.f32.mrf.mxu0
          %v860 = vadd.f32 %v607, %v859
          %v861 = vpop.f32.mrf.mxu0
          %v862 = vadd.f32 %v607, %v861
          %863 = vmatprep.mubr.f32.mxu0 0.0
          %864 = vmatmul.mubr.f32.gmra.mxu0 %v393
          %v865 = vpop.f32.mrf.mxu0
          %v866 = vadd.f32 %v612, %v865
          %v867 = vpop.f32.mrf.mxu0
          %v868 = vadd.f32 %v612, %v867
          %869 = vmatprep.mubr.f32.mxu0 0.0
          %870 = vmatmul.mubr.f32.gmra.mxu0 %v394
          %v871 = vpop.f32.mrf.mxu0
          %v872 = vadd.f32 %v617, %v871
          %v873 = vpop.f32.mrf.mxu0
          %v874 = vadd.f32 %v617, %v873
          %875 = vdwg.mxu0
          %876 = vxpose.xlu0.b32.start [1/16] %v686, 128
          %877 = vxpose.xlu0.b32.cont [2/16] %v692, 128
          %878 = vxpose.xlu0.b32.cont [3/16] %v698, 128
          %879 = vxpose.xlu0.b32.cont [4/16] %v704, 128
          %880 = vxpose.xlu0.b32.cont [5/16] %v710, 128
          %881 = vxpose.xlu0.b32.cont [6/16] %v716, 128
          %882 = vxpose.xlu0.b32.cont [7/16] %v722, 128
          %883 = vxpose.xlu0.b32.cont [8/16] %v728, 128
          %884 = vxpose.xlu0.b32.cont [9/16] %v734, 128
          %885 = vxpose.xlu0.b32.cont [10/16] %v740, 128
          %886 = vxpose.xlu0.b32.cont [11/16] %v746, 128
          %887 = vxpose.xlu0.b32.cont [12/16] %v752, 128
          %888 = vxpose.xlu0.b32.cont [13/16] %v758, 128
          %889 = vxpose.xlu0.b32.cont [14/16] %v764, 128
          %890 = vxpose.xlu0.b32.cont [15/16] %v770, 128
          %891 = vxpose.xlu0.b32.end [16/16] %v776, 128
          %v892 = vpop.trf.xlu0
          %v893 = vpop.trf.xlu0
          %v894 = vpop.trf.xlu0
          %v895 = vpop.trf.xlu0
          %v896 = vpop.trf.xlu0
          %v897 = vpop.trf.xlu0
          %v898 = vpop.trf.xlu0
          %v899 = vpop.trf.xlu0
          %v900 = vpop.trf.xlu0
          %v901 = vpop.trf.xlu0
          %v902 = vpop.trf.xlu0
          %v903 = vpop.trf.xlu0
          %v904 = vpop.trf.xlu0
          %v905 = vpop.trf.xlu0
          %v906 = vpop.trf.xlu0
          %v907 = vpop.trf.xlu0
          %908 = vxpose.xlu0.b32.start [1/16] %v688, 128
          %909 = vxpose.xlu0.b32.cont [2/16] %v694, 128
          %910 = vxpose.xlu0.b32.cont [3/16] %v700, 128
          %911 = vxpose.xlu0.b32.cont [4/16] %v706, 128
          %912 = vxpose.xlu0.b32.cont [5/16] %v712, 128
          %913 = vxpose.xlu0.b32.cont [6/16] %v718, 128
          %914 = vxpose.xlu0.b32.cont [7/16] %v724, 128
          %915 = vxpose.xlu0.b32.cont [8/16] %v730, 128
          %916 = vxpose.xlu0.b32.cont [9/16] %v736, 128
          %917 = vxpose.xlu0.b32.cont [10/16] %v742, 128
          %918 = vxpose.xlu0.b32.cont [11/16] %v748, 128
          %919 = vxpose.xlu0.b32.cont [12/16] %v754, 128
          %920 = vxpose.xlu0.b32.cont [13/16] %v760, 128
          %921 = vxpose.xlu0.b32.cont [14/16] %v766, 128
          %922 = vxpose.xlu0.b32.cont [15/16] %v772, 128
          %923 = vxpose.xlu0.b32.end [16/16] %v778, 128
          %v924 = vpop.trf.xlu0
          %v925 = vpop.trf.xlu0
          %v926 = vpop.trf.xlu0
          %v927 = vpop.trf.xlu0
          %v928 = vpop.trf.xlu0
          %v929 = vpop.trf.xlu0
          %v930 = vpop.trf.xlu0
          %v931 = vpop.trf.xlu0
          %v932 = vpop.trf.xlu0
          %v933 = vpop.trf.xlu0
          %v934 = vpop.trf.xlu0
          %v935 = vpop.trf.xlu0
          %v936 = vpop.trf.xlu0
          %v937 = vpop.trf.xlu0
          %v938 = vpop.trf.xlu0
          %v939 = vpop.trf.xlu0
          %940 = vxpose.xlu0.b32.start [1/16] %v782, 128
          %941 = vxpose.xlu0.b32.cont [2/16] %v788, 128
          %942 = vxpose.xlu0.b32.cont [3/16] %v794, 128
          %943 = vxpose.xlu0.b32.cont [4/16] %v800, 128
          %944 = vxpose.xlu0.b32.cont [5/16] %v806, 128
          %945 = vxpose.xlu0.b32.cont [6/16] %v812, 128
          %946 = vxpose.xlu0.b32.cont [7/16] %v818, 128
          %947 = vxpose.xlu0.b32.cont [8/16] %v824, 128
          %948 = vxpose.xlu0.b32.cont [9/16] %v830, 128
          %949 = vxpose.xlu0.b32.cont [10/16] %v836, 128
          %950 = vxpose.xlu0.b32.cont [11/16] %v842, 128
          %951 = vxpose.xlu0.b32.cont [12/16] %v848, 128
          %952 = vxpose.xlu0.b32.cont [13/16] %v854, 128
          %953 = vxpose.xlu0.b32.cont [14/16] %v860, 128
          %954 = vxpose.xlu0.b32.cont [15/16] %v866, 128
          %955 = vxpose.xlu0.b32.end [16/16] %v872, 128
          %v956 = vpop.trf.xlu0
          %v957 = vpop.trf.xlu0
          %v958 = vpop.trf.xlu0
          %v959 = vpop.trf.xlu0
          %v960 = vpop.trf.xlu0
          %v961 = vpop.trf.xlu0
          %v962 = vpop.trf.xlu0
          %v963 = vpop.trf.xlu0
          %v964 = vpop.trf.xlu0
          %v965 = vpop.trf.xlu0
          %v966 = vpop.trf.xlu0
          %v967 = vpop.trf.xlu0
          %v968 = vpop.trf.xlu0
          %v969 = vpop.trf.xlu0
          %v970 = vpop.trf.xlu0
          %v971 = vpop.trf.xlu0
          %972 = vxpose.xlu0.b32.start [1/16] %v784, 128
          %973 = vxpose.xlu0.b32.cont [2/16] %v790, 128
          %974 = vxpose.xlu0.b32.cont [3/16] %v796, 128
          %975 = vxpose.xlu0.b32.cont [4/16] %v802, 128
          %976 = vxpose.xlu0.b32.cont [5/16] %v808, 128
          %977 = vxpose.xlu0.b32.cont [6/16] %v814, 128
          %978 = vxpose.xlu0.b32.cont [7/16] %v820, 128
          %979 = vxpose.xlu0.b32.cont [8/16] %v826, 128
          %980 = vxpose.xlu0.b32.cont [9/16] %v832, 128
          %981 = vxpose.xlu0.b32.cont [10/16] %v838, 128
          %982 = vxpose.xlu0.b32.cont [11/16] %v844, 128
          %983 = vxpose.xlu0.b32.cont [12/16] %v850, 128
          %984 = vxpose.xlu0.b32.cont [13/16] %v856, 128
          %985 = vxpose.xlu0.b32.cont [14/16] %v862, 128
          %986 = vxpose.xlu0.b32.cont [15/16] %v868, 128
          %987 = vxpose.xlu0.b32.end [16/16] %v874, 128
          %v988 = vpop.trf.xlu0
          %v989 = vpop.trf.xlu0
          %v990 = vpop.trf.xlu0
          %v991 = vpop.trf.xlu0
          %v992 = vpop.trf.xlu0
          %v993 = vpop.trf.xlu0
          %v994 = vpop.trf.xlu0
          %v995 = vpop.trf.xlu0
          %v996 = vpop.trf.xlu0
          %v997 = vpop.trf.xlu0
          %v998 = vpop.trf.xlu0
          %v999 = vpop.trf.xlu0
          %v1000 = vpop.trf.xlu0
          %v1001 = vpop.trf.xlu0
          %v1002 = vpop.trf.xlu0
          %v1003 = vpop.trf.xlu0
          %s1004 = sshra.s32 %s358, 3
          %s1005 = sand.u32 %s358, 7
          %s1006 = smul.u32 %s1004, 2
          %s1007 = smul.addr %s1006, 8
          %s1008 = scalar_lea.vmem [#allocation2], %s1007
          %1009 = vst [vmem:[%s1008] sm:$0xff] %v892
          %1010 = vst [vmem:[%s1008 + $0x8] sm:$0xff] %v956
          %1011 = vst [vmem:[%s1008 + $0x10] sm:$0xff] %v893
          %1012 = vst [vmem:[%s1008 + $0x18] sm:$0xff] %v957
          %1013 = vst [vmem:[%s1008 + $0x20] sm:$0xff] %v894
          %1014 = vst [vmem:[%s1008 + $0x28] sm:$0xff] %v958
          %1015 = vst [vmem:[%s1008 + $0x30] sm:$0xff] %v895
          %1016 = vst [vmem:[%s1008 + $0x38] sm:$0xff] %v959
          %1017 = vst [vmem:[%s1008 + $0x40] sm:$0xff] %v896
          %1018 = vst [vmem:[%s1008 + $0x48] sm:$0xff] %v960
          %1019 = vst [vmem:[%s1008 + $0x50] sm:$0xff] %v897
          %1020 = vst [vmem:[%s1008 + $0x58] sm:$0xff] %v961
          %1021 = vst [vmem:[%s1008 + $0x60] sm:$0xff] %v898
          %1022 = vst [vmem:[%s1008 + $0x68] sm:$0xff] %v962
          %1023 = vst [vmem:[%s1008 + $0x70] sm:$0xff] %v899
          %1024 = vst [vmem:[%s1008 + $0x78] sm:$0xff] %v963
          %1025 = vst [vmem:[%s1008 + $0x80] sm:$0xff] %v900
          %1026 = vst [vmem:[%s1008 + $0x88] sm:$0xff] %v964
          %1027 = vst [vmem:[%s1008 + $0x90] sm:$0xff] %v901
          %1028 = vst [vmem:[%s1008 + $0x98] sm:$0xff] %v965
          %1029 = vst [vmem:[%s1008 + $0xa0] sm:$0xff] %v902
          %1030 = vst [vmem:[%s1008 + $0xa8] sm:$0xff] %v966
          %1031 = vst [vmem:[%s1008 + $0xb0] sm:$0xff] %v903
          %1032 = vst [vmem:[%s1008 + $0xb8] sm:$0xff] %v967
          %1033 = vst [vmem:[%s1008 + $0xc0] sm:$0xff] %v904
          %1034 = vst [vmem:[%s1008 + $0xc8] sm:$0xff] %v968
          %1035 = vst [vmem:[%s1008 + $0xd0] sm:$0xff] %v905
          %1036 = vst [vmem:[%s1008 + $0xd8] sm:$0xff] %v969
          %1037 = vst [vmem:[%s1008 + $0xe0] sm:$0xff] %v906
          %1038 = vst [vmem:[%s1008 + $0xe8] sm:$0xff] %v970
          %1039 = vst [vmem:[%s1008 + $0xf0] sm:$0xff] %v907
          %1040 = vst [vmem:[%s1008 + $0xf8] sm:$0xff] %v971
          %1041 = vst [vmem:[%s1008 + $0x100] sm:$0xff] %v924
          %1042 = vst [vmem:[%s1008 + $0x108] sm:$0xff] %v988
          %1043 = vst [vmem:[%s1008 + $0x110] sm:$0xff] %v925
          %1044 = vst [vmem:[%s1008 + $0x118] sm:$0xff] %v989
          %1045 = vst [vmem:[%s1008 + $0x120] sm:$0xff] %v926
          %1046 = vst [vmem:[%s1008 + $0x128] sm:$0xff] %v990
          %1047 = vst [vmem:[%s1008 + $0x130] sm:$0xff] %v927
          %1048 = vst [vmem:[%s1008 + $0x138] sm:$0xff] %v991
          %1049 = vst [vmem:[%s1008 + $0x140] sm:$0xff] %v928
          %1050 = vst [vmem:[%s1008 + $0x148] sm:$0xff] %v992
          %1051 = vst [vmem:[%s1008 + $0x150] sm:$0xff] %v929
          %1052 = vst [vmem:[%s1008 + $0x158] sm:$0xff] %v993
          %1053 = vst [vmem:[%s1008 + $0x160] sm:$0xff] %v930
          %1054 = vst [vmem:[%s1008 + $0x168] sm:$0xff] %v994
          %1055 = vst [vmem:[%s1008 + $0x170] sm:$0xff] %v931
          %1056 = vst [vmem:[%s1008 + $0x178] sm:$0xff] %v995
          %1057 = vst [vmem:[%s1008 + $0x180] sm:$0xff] %v932
          %1058 = vst [vmem:[%s1008 + $0x188] sm:$0xff] %v996
          %1059 = vst [vmem:[%s1008 + $0x190] sm:$0xff] %v933
          %1060 = vst [vmem:[%s1008 + $0x198] sm:$0xff] %v997
          %1061 = vst [vmem:[%s1008 + $0x1a0] sm:$0xff] %v934
          %1062 = vst [vmem:[%s1008 + $0x1a8] sm:$0xff] %v998
          %1063 = vst [vmem:[%s1008 + $0x1b0] sm:$0xff] %v935
          %1064 = vst [vmem:[%s1008 + $0x1b8] sm:$0xff] %v999
          %1065 = vst [vmem:[%s1008 + $0x1c0] sm:$0xff] %v936
          %1066 = vst [vmem:[%s1008 + $0x1c8] sm:$0xff] %v1000
          %1067 = vst [vmem:[%s1008 + $0x1d0] sm:$0xff] %v937
          %1068 = vst [vmem:[%s1008 + $0x1d8] sm:$0xff] %v1001
          %1069 = vst [vmem:[%s1008 + $0x1e0] sm:$0xff] %v938
          %1070 = vst [vmem:[%s1008 + $0x1e8] sm:$0xff] %v1002
          %1071 = vst [vmem:[%s1008 + $0x1f0] sm:$0xff] %v939
          %1072 = vst [vmem:[%s1008 + $0x1f8] sm:$0xff] %v1003
        $region48: #{tpu_custom_call.1} parent=39 // pred_fallthru
          _
        %p1073 = scmp.eq.s32.totalorder %s27, 0
        // Predicated region
        $region49: #{tpu_custom_call.1} parent=39 // pred_check
          %p1074 = pneg %p1073
        $region50: #{tpu_custom_call.1} parent=39 // pred_check_branch
          %1076 = sbr.rel (%p1074) target = $region52
        $region51: #{tpu_custom_call.1} parent=39 // pred_region
          %v1077 = vld [vmem:[%s354] sm:$0xff]
          %v1078 = vld [vmem:[%s354 + $0x8] sm:$0xff]
          %v1079 = vld [vmem:[%s354 + $0x10] sm:$0xff]
          %v1080 = vld [vmem:[%s354 + $0x18] sm:$0xff]
          %v1081 = vld [vmem:[%s354 + $0x20] sm:$0xff]
          %v1082 = vld [vmem:[%s354 + $0x28] sm:$0xff]
          %v1083 = vld [vmem:[%s354 + $0x30] sm:$0xff]
          %v1084 = vld [vmem:[%s354 + $0x38] sm:$0xff]
          %v1085 = vld [vmem:[%s354 + $0x40] sm:$0xff]
          %v1086 = vld [vmem:[%s354 + $0x48] sm:$0xff]
          %v1087 = vld [vmem:[%s354 + $0x50] sm:$0xff]
          %v1088 = vld [vmem:[%s354 + $0x58] sm:$0xff]
          %v1089 = vld [vmem:[%s354 + $0x60] sm:$0xff]
          %v1090 = vld [vmem:[%s354 + $0x68] sm:$0xff]
          %v1091 = vld [vmem:[%s354 + $0x70] sm:$0xff]
          %v1092 = vld [vmem:[%s354 + $0x78] sm:$0xff]
          %v1093 = vld [vmem:[%s354 + $0x80] sm:$0xff]
          %v1094 = vld [vmem:[%s354 + $0x88] sm:$0xff]
          %v1095 = vld [vmem:[%s354 + $0x90] sm:$0xff]
          %v1096 = vld [vmem:[%s354 + $0x98] sm:$0xff]
          %v1097 = vld [vmem:[%s354 + $0xa0] sm:$0xff]
          %v1098 = vld [vmem:[%s354 + $0xa8] sm:$0xff]
          %v1099 = vld [vmem:[%s354 + $0xb0] sm:$0xff]
          %v1100 = vld [vmem:[%s354 + $0xb8] sm:$0xff]
          %v1101 = vld [vmem:[%s354 + $0xc0] sm:$0xff]
          %v1102 = vld [vmem:[%s354 + $0xc8] sm:$0xff]
          %v1103 = vld [vmem:[%s354 + $0xd0] sm:$0xff]
          %v1104 = vld [vmem:[%s354 + $0xd8] sm:$0xff]
          %v1105 = vld [vmem:[%s354 + $0xe0] sm:$0xff]
          %v1106 = vld [vmem:[%s354 + $0xe8] sm:$0xff]
          %v1107 = vld [vmem:[%s354 + $0xf0] sm:$0xff]
          %v1108 = vld [vmem:[%s354 + $0xf8] sm:$0xff]
          %1110 = vset.pattern.permute.xlu0 0
          %1111 = vperm.xlu0 %1110, %v1077
          %v1112 = vpop.permute.xlu0 %1111
          %1115 = vset.pattern.permute.xlu0 0
          %1116 = vperm.xlu0 %1115, %v1078
          %v1117 = vpop.permute.xlu0 %1116
          %1120 = vset.pattern.permute.xlu0 0
          %1121 = vperm.xlu0 %1120, %v1079
          %v1122 = vpop.permute.xlu0 %1121
          %1125 = vset.pattern.permute.xlu0 0
          %1126 = vperm.xlu0 %1125, %v1080
          %v1127 = vpop.permute.xlu0 %1126
          %1130 = vset.pattern.permute.xlu0 0
          %1131 = vperm.xlu0 %1130, %v1081
          %v1132 = vpop.permute.xlu0 %1131
          %1135 = vset.pattern.permute.xlu0 0
          %1136 = vperm.xlu0 %1135, %v1082
          %v1137 = vpop.permute.xlu0 %1136
          %1140 = vset.pattern.permute.xlu0 0
          %1141 = vperm.xlu0 %1140, %v1083
          %v1142 = vpop.permute.xlu0 %1141
          %1145 = vset.pattern.permute.xlu0 0
          %1146 = vperm.xlu0 %1145, %v1084
          %v1147 = vpop.permute.xlu0 %1146
          %1150 = vset.pattern.permute.xlu0 0
          %1151 = vperm.xlu0 %1150, %v1085
          %v1152 = vpop.permute.xlu0 %1151
          %1155 = vset.pattern.permute.xlu0 0
          %1156 = vperm.xlu0 %1155, %v1086
          %v1157 = vpop.permute.xlu0 %1156
          %1160 = vset.pattern.permute.xlu0 0
          %1161 = vperm.xlu0 %1160, %v1087
          %v1162 = vpop.permute.xlu0 %1161
          %1165 = vset.pattern.permute.xlu0 0
          %1166 = vperm.xlu0 %1165, %v1088
          %v1167 = vpop.permute.xlu0 %1166
          %1170 = vset.pattern.permute.xlu0 0
          %1171 = vperm.xlu0 %1170, %v1089
          %v1172 = vpop.permute.xlu0 %1171
          %1175 = vset.pattern.permute.xlu0 0
          %1176 = vperm.xlu0 %1175, %v1090
          %v1177 = vpop.permute.xlu0 %1176
          %1180 = vset.pattern.permute.xlu0 0
          %1181 = vperm.xlu0 %1180, %v1091
          %v1182 = vpop.permute.xlu0 %1181
          %1185 = vset.pattern.permute.xlu0 0
          %1186 = vperm.xlu0 %1185, %v1092
          %v1187 = vpop.permute.xlu0 %1186
          %1190 = vset.pattern.permute.xlu0 0
          %1191 = vperm.xlu0 %1190, %v1093
          %v1192 = vpop.permute.xlu0 %1191
          %1195 = vset.pattern.permute.xlu0 0
          %1196 = vperm.xlu0 %1195, %v1094
          %v1197 = vpop.permute.xlu0 %1196
          %1200 = vset.pattern.permute.xlu0 0
          %1201 = vperm.xlu0 %1200, %v1095
          %v1202 = vpop.permute.xlu0 %1201
          %1205 = vset.pattern.permute.xlu0 0
          %1206 = vperm.xlu0 %1205, %v1096
          %v1207 = vpop.permute.xlu0 %1206
          %1210 = vset.pattern.permute.xlu0 0
          %1211 = vperm.xlu0 %1210, %v1097
          %v1212 = vpop.permute.xlu0 %1211
          %1215 = vset.pattern.permute.xlu0 0
          %1216 = vperm.xlu0 %1215, %v1098
          %v1217 = vpop.permute.xlu0 %1216
          %1220 = vset.pattern.permute.xlu0 0
          %1221 = vperm.xlu0 %1220, %v1099
          %v1222 = vpop.permute.xlu0 %1221
          %1225 = vset.pattern.permute.xlu0 0
          %1226 = vperm.xlu0 %1225, %v1100
          %v1227 = vpop.permute.xlu0 %1226
          %1230 = vset.pattern.permute.xlu0 0
          %1231 = vperm.xlu0 %1230, %v1101
          %v1232 = vpop.permute.xlu0 %1231
          %1235 = vset.pattern.permute.xlu0 0
          %1236 = vperm.xlu0 %1235, %v1102
          %v1237 = vpop.permute.xlu0 %1236
          %1240 = vset.pattern.permute.xlu0 0
          %1241 = vperm.xlu0 %1240, %v1103
          %v1242 = vpop.permute.xlu0 %1241
          %1245 = vset.pattern.permute.xlu0 0
          %1246 = vperm.xlu0 %1245, %v1104
          %v1247 = vpop.permute.xlu0 %1246
          %1250 = vset.pattern.permute.xlu0 0
          %1251 = vperm.xlu0 %1250, %v1105
          %v1252 = vpop.permute.xlu0 %1251
          %1255 = vset.pattern.permute.xlu0 0
          %1256 = vperm.xlu0 %1255, %v1106
          %v1257 = vpop.permute.xlu0 %1256
          %1260 = vset.pattern.permute.xlu0 0
          %1261 = vperm.xlu0 %1260, %v1107
          %v1262 = vpop.permute.xlu0 %1261
          %1265 = vset.pattern.permute.xlu0 0
          %1266 = vperm.xlu0 %1265, %v1108
          %v1267 = vpop.permute.xlu0 %1266
          %1269 = vst [vmem:[%s325] sm:$0xff] %v1112
          %1270 = vst [vmem:[%s325 + $0x8] sm:$0xff] %v1112
          %1271 = vst [vmem:[%s325 + $0x10] sm:$0xff] %v1117
          %1272 = vst [vmem:[%s325 + $0x18] sm:$0xff] %v1117
          %1273 = vst [vmem:[%s325 + $0x20] sm:$0xff] %v1122
          %1274 = vst [vmem:[%s325 + $0x28] sm:$0xff] %v1122
          %1275 = vst [vmem:[%s325 + $0x30] sm:$0xff] %v1127
          %1276 = vst [vmem:[%s325 + $0x38] sm:$0xff] %v1127
          %1277 = vst [vmem:[%s325 + $0x40] sm:$0xff] %v1132
          %1278 = vst [vmem:[%s325 + $0x48] sm:$0xff] %v1132
          %1279 = vst [vmem:[%s325 + $0x50] sm:$0xff] %v1137
          %1280 = vst [vmem:[%s325 + $0x58] sm:$0xff] %v1137
          %1281 = vst [vmem:[%s325 + $0x60] sm:$0xff] %v1142
          %1282 = vst [vmem:[%s325 + $0x68] sm:$0xff] %v1142
          %1283 = vst [vmem:[%s325 + $0x70] sm:$0xff] %v1147
          %1284 = vst [vmem:[%s325 + $0x78] sm:$0xff] %v1147
          %1285 = vst [vmem:[%s325 + $0x80] sm:$0xff] %v1152
          %1286 = vst [vmem:[%s325 + $0x88] sm:$0xff] %v1152
          %1287 = vst [vmem:[%s325 + $0x90] sm:$0xff] %v1157
          %1288 = vst [vmem:[%s325 + $0x98] sm:$0xff] %v1157
          %1289 = vst [vmem:[%s325 + $0xa0] sm:$0xff] %v1162
          %1290 = vst [vmem:[%s325 + $0xa8] sm:$0xff] %v1162
          %1291 = vst [vmem:[%s325 + $0xb0] sm:$0xff] %v1167
          %1292 = vst [vmem:[%s325 + $0xb8] sm:$0xff] %v1167
          %1293 = vst [vmem:[%s325 + $0xc0] sm:$0xff] %v1172
          %1294 = vst [vmem:[%s325 + $0xc8] sm:$0xff] %v1172
          %1295 = vst [vmem:[%s325 + $0xd0] sm:$0xff] %v1177
          %1296 = vst [vmem:[%s325 + $0xd8] sm:$0xff] %v1177
          %1297 = vst [vmem:[%s325 + $0xe0] sm:$0xff] %v1182
          %1298 = vst [vmem:[%s325 + $0xe8] sm:$0xff] %v1182
          %1299 = vst [vmem:[%s325 + $0xf0] sm:$0xff] %v1187
          %1300 = vst [vmem:[%s325 + $0xf8] sm:$0xff] %v1187
          %1301 = vst [vmem:[%s325 + $0x100] sm:$0xff] %v1192
          %1302 = vst [vmem:[%s325 + $0x108] sm:$0xff] %v1192
          %1303 = vst [vmem:[%s325 + $0x110] sm:$0xff] %v1197
          %1304 = vst [vmem:[%s325 + $0x118] sm:$0xff] %v1197
          %1305 = vst [vmem:[%s325 + $0x120] sm:$0xff] %v1202
          %1306 = vst [vmem:[%s325 + $0x128] sm:$0xff] %v1202
          %1307 = vst [vmem:[%s325 + $0x130] sm:$0xff] %v1207
          %1308 = vst [vmem:[%s325 + $0x138] sm:$0xff] %v1207
          %1309 = vst [vmem:[%s325 + $0x140] sm:$0xff] %v1212
          %1310 = vst [vmem:[%s325 + $0x148] sm:$0xff] %v1212
          %1311 = vst [vmem:[%s325 + $0x150] sm:$0xff] %v1217
          %1312 = vst [vmem:[%s325 + $0x158] sm:$0xff] %v1217
          %1313 = vst [vmem:[%s325 + $0x160] sm:$0xff] %v1222
          %1314 = vst [vmem:[%s325 + $0x168] sm:$0xff] %v1222
          %1315 = vst [vmem:[%s325 + $0x170] sm:$0xff] %v1227
          %1316 = vst [vmem:[%s325 + $0x178] sm:$0xff] %v1227
          %1317 = vst [vmem:[%s325 + $0x180] sm:$0xff] %v1232
          %1318 = vst [vmem:[%s325 + $0x188] sm:$0xff] %v1232
          %1319 = vst [vmem:[%s325 + $0x190] sm:$0xff] %v1237
          %1320 = vst [vmem:[%s325 + $0x198] sm:$0xff] %v1237
          %1321 = vst [vmem:[%s325 + $0x1a0] sm:$0xff] %v1242
          %1322 = vst [vmem:[%s325 + $0x1a8] sm:$0xff] %v1242
          %1323 = vst [vmem:[%s325 + $0x1b0] sm:$0xff] %v1247
          %1324 = vst [vmem:[%s325 + $0x1b8] sm:$0xff] %v1247
          %1325 = vst [vmem:[%s325 + $0x1c0] sm:$0xff] %v1252
          %1326 = vst [vmem:[%s325 + $0x1c8] sm:$0xff] %v1252
          %1327 = vst [vmem:[%s325 + $0x1d0] sm:$0xff] %v1257
          %1328 = vst [vmem:[%s325 + $0x1d8] sm:$0xff] %v1257
          %1329 = vst [vmem:[%s325 + $0x1e0] sm:$0xff] %v1262
          %1330 = vst [vmem:[%s325 + $0x1e8] sm:$0xff] %v1262
          %1331 = vst [vmem:[%s325 + $0x1f0] sm:$0xff] %v1267
          %1332 = vst [vmem:[%s325 + $0x1f8] sm:$0xff] %v1267
        $region52: #{tpu_custom_call.1} parent=39 // pred_fallthru
          _
        %v1333 = vld [vmem:[%s325] sm:$0xff]
        %v1334 = vld [vmem:[%s325 + $0x8] sm:$0xff]
        %v1335 = vld [vmem:[%s325 + $0x10] sm:$0xff]
        %v1336 = vld [vmem:[%s325 + $0x18] sm:$0xff]
        %v1337 = vld [vmem:[%s325 + $0x20] sm:$0xff]
        %v1338 = vld [vmem:[%s325 + $0x28] sm:$0xff]
        %v1339 = vld [vmem:[%s325 + $0x30] sm:$0xff]
        %v1340 = vld [vmem:[%s325 + $0x38] sm:$0xff]
        %v1341 = vld [vmem:[%s325 + $0x40] sm:$0xff]
        %v1342 = vld [vmem:[%s325 + $0x48] sm:$0xff]
        %v1343 = vld [vmem:[%s325 + $0x50] sm:$0xff]
        %v1344 = vld [vmem:[%s325 + $0x58] sm:$0xff]
        %v1345 = vld [vmem:[%s325 + $0x60] sm:$0xff]
        %v1346 = vld [vmem:[%s325 + $0x68] sm:$0xff]
        %v1347 = vld [vmem:[%s325 + $0x70] sm:$0xff]
        %v1348 = vld [vmem:[%s325 + $0x78] sm:$0xff]
        %v1349 = vld [vmem:[%s325 + $0x80] sm:$0xff]
        %v1350 = vld [vmem:[%s325 + $0x88] sm:$0xff]
        %v1351 = vld [vmem:[%s325 + $0x90] sm:$0xff]
        %v1352 = vld [vmem:[%s325 + $0x98] sm:$0xff]
        %v1353 = vld [vmem:[%s325 + $0xa0] sm:$0xff]
        %v1354 = vld [vmem:[%s325 + $0xa8] sm:$0xff]
        %v1355 = vld [vmem:[%s325 + $0xb0] sm:$0xff]
        %v1356 = vld [vmem:[%s325 + $0xb8] sm:$0xff]
        %v1357 = vld [vmem:[%s325 + $0xc0] sm:$0xff]
        %v1358 = vld [vmem:[%s325 + $0xc8] sm:$0xff]
        %v1359 = vld [vmem:[%s325 + $0xd0] sm:$0xff]
        %v1360 = vld [vmem:[%s325 + $0xd8] sm:$0xff]
        %v1361 = vld [vmem:[%s325 + $0xe0] sm:$0xff]
        %v1362 = vld [vmem:[%s325 + $0xe8] sm:$0xff]
        %v1363 = vld [vmem:[%s325 + $0xf0] sm:$0xff]
        %v1364 = vld [vmem:[%s325 + $0xf8] sm:$0xff]
        %v1365 = vld [vmem:[%s325 + $0x100] sm:$0xff]
        %v1366 = vld [vmem:[%s325 + $0x108] sm:$0xff]
        %v1367 = vld [vmem:[%s325 + $0x110] sm:$0xff]
        %v1368 = vld [vmem:[%s325 + $0x118] sm:$0xff]
        %v1369 = vld [vmem:[%s325 + $0x120] sm:$0xff]
        %v1370 = vld [vmem:[%s325 + $0x128] sm:$0xff]
        %v1371 = vld [vmem:[%s325 + $0x130] sm:$0xff]
        %v1372 = vld [vmem:[%s325 + $0x138] sm:$0xff]
        %v1373 = vld [vmem:[%s325 + $0x140] sm:$0xff]
        %v1374 = vld [vmem:[%s325 + $0x148] sm:$0xff]
        %v1375 = vld [vmem:[%s325 + $0x150] sm:$0xff]
        %v1376 = vld [vmem:[%s325 + $0x158] sm:$0xff]
        %v1377 = vld [vmem:[%s325 + $0x160] sm:$0xff]
        %v1378 = vld [vmem:[%s325 + $0x168] sm:$0xff]
        %v1379 = vld [vmem:[%s325 + $0x170] sm:$0xff]
        %v1380 = vld [vmem:[%s325 + $0x178] sm:$0xff]
        %v1381 = vld [vmem:[%s325 + $0x180] sm:$0xff]
        %v1382 = vld [vmem:[%s325 + $0x188] sm:$0xff]
        %v1383 = vld [vmem:[%s325 + $0x190] sm:$0xff]
        %v1384 = vld [vmem:[%s325 + $0x198] sm:$0xff]
        %v1385 = vld [vmem:[%s325 + $0x1a0] sm:$0xff]
        %v1386 = vld [vmem:[%s325 + $0x1a8] sm:$0xff]
        %v1387 = vld [vmem:[%s325 + $0x1b0] sm:$0xff]
        %v1388 = vld [vmem:[%s325 + $0x1b8] sm:$0xff]
        %v1389 = vld [vmem:[%s325 + $0x1c0] sm:$0xff]
        %v1390 = vld [vmem:[%s325 + $0x1c8] sm:$0xff]
        %v1391 = vld [vmem:[%s325 + $0x1d0] sm:$0xff]
        %v1392 = vld [vmem:[%s325 + $0x1d8] sm:$0xff]
        %v1393 = vld [vmem:[%s325 + $0x1e0] sm:$0xff]
        %v1394 = vld [vmem:[%s325 + $0x1e8] sm:$0xff]
        %v1395 = vld [vmem:[%s325 + $0x1f0] sm:$0xff]
        %v1396 = vld [vmem:[%s325 + $0x1f8] sm:$0xff]
        %v1397 = vld [vmem:[#allocation3] sm:$0xff]
        %v1398 = vld [vmem:[#allocation3 + $0x8] sm:$0xff]
        %v1399 = vld [vmem:[#allocation3 + $0x10] sm:$0xff]
        %v1400 = vld [vmem:[#allocation3 + $0x18] sm:$0xff]
        %v1401 = vld [vmem:[#allocation3 + $0x20] sm:$0xff]
        %v1402 = vld [vmem:[#allocation3 + $0x28] sm:$0xff]
        %v1403 = vld [vmem:[#allocation3 + $0x30] sm:$0xff]
        %v1404 = vld [vmem:[#allocation3 + $0x38] sm:$0xff]
        %v1405 = vld [vmem:[#allocation3 + $0x40] sm:$0xff]
        %v1406 = vld [vmem:[#allocation3 + $0x48] sm:$0xff]
        %v1407 = vld [vmem:[#allocation3 + $0x50] sm:$0xff]
        %v1408 = vld [vmem:[#allocation3 + $0x58] sm:$0xff]
        %v1409 = vld [vmem:[#allocation3 + $0x60] sm:$0xff]
        %v1410 = vld [vmem:[#allocation3 + $0x68] sm:$0xff]
        %v1411 = vld [vmem:[#allocation3 + $0x70] sm:$0xff]
        %v1412 = vld [vmem:[#allocation3 + $0x78] sm:$0xff]
        %v1413 = vld [vmem:[#allocation3 + $0x80] sm:$0xff]
        %v1414 = vld [vmem:[#allocation3 + $0x88] sm:$0xff]
        %v1415 = vld [vmem:[#allocation3 + $0x90] sm:$0xff]
        %v1416 = vld [vmem:[#allocation3 + $0x98] sm:$0xff]
        %v1417 = vld [vmem:[#allocation3 + $0xa0] sm:$0xff]
        %v1418 = vld [vmem:[#allocation3 + $0xa8] sm:$0xff]
        %v1419 = vld [vmem:[#allocation3 + $0xb0] sm:$0xff]
        %v1420 = vld [vmem:[#allocation3 + $0xb8] sm:$0xff]
        %v1421 = vld [vmem:[#allocation3 + $0xc0] sm:$0xff]
        %v1422 = vld [vmem:[#allocation3 + $0xc8] sm:$0xff]
        %v1423 = vld [vmem:[#allocation3 + $0xd0] sm:$0xff]
        %v1424 = vld [vmem:[#allocation3 + $0xd8] sm:$0xff]
        %v1425 = vld [vmem:[#allocation3 + $0xe0] sm:$0xff]
        %v1426 = vld [vmem:[#allocation3 + $0xe8] sm:$0xff]
        %v1427 = vld [vmem:[#allocation3 + $0xf0] sm:$0xff]
        %v1428 = vld [vmem:[#allocation3 + $0xf8] sm:$0xff]
        %v1429 = vld [vmem:[#allocation3 + $0x100] sm:$0xff]
        %v1430 = vld [vmem:[#allocation3 + $0x108] sm:$0xff]
        %v1431 = vld [vmem:[#allocation3 + $0x110] sm:$0xff]
        %v1432 = vld [vmem:[#allocation3 + $0x118] sm:$0xff]
        %v1433 = vld [vmem:[#allocation3 + $0x120] sm:$0xff]
        %v1434 = vld [vmem:[#allocation3 + $0x128] sm:$0xff]
        %v1435 = vld [vmem:[#allocation3 + $0x130] sm:$0xff]
        %v1436 = vld [vmem:[#allocation3 + $0x138] sm:$0xff]
        %v1437 = vld [vmem:[#allocation3 + $0x140] sm:$0xff]
        %v1438 = vld [vmem:[#allocation3 + $0x148] sm:$0xff]
        %v1439 = vld [vmem:[#allocation3 + $0x150] sm:$0xff]
        %v1440 = vld [vmem:[#allocation3 + $0x158] sm:$0xff]
        %v1441 = vld [vmem:[#allocation3 + $0x160] sm:$0xff]
        %v1442 = vld [vmem:[#allocation3 + $0x168] sm:$0xff]
        %v1443 = vld [vmem:[#allocation3 + $0x170] sm:$0xff]
        %v1444 = vld [vmem:[#allocation3 + $0x178] sm:$0xff]
        %v1445 = vld [vmem:[#allocation3 + $0x180] sm:$0xff]
        %v1446 = vld [vmem:[#allocation3 + $0x188] sm:$0xff]
        %v1447 = vld [vmem:[#allocation3 + $0x190] sm:$0xff]
        %v1448 = vld [vmem:[#allocation3 + $0x198] sm:$0xff]
        %v1449 = vld [vmem:[#allocation3 + $0x1a0] sm:$0xff]
        %v1450 = vld [vmem:[#allocation3 + $0x1a8] sm:$0xff]
        %v1451 = vld [vmem:[#allocation3 + $0x1b0] sm:$0xff]
        %v1452 = vld [vmem:[#allocation3 + $0x1b8] sm:$0xff]
        %v1453 = vld [vmem:[#allocation3 + $0x1c0] sm:$0xff]
        %v1454 = vld [vmem:[#allocation3 + $0x1c8] sm:$0xff]
        %v1455 = vld [vmem:[#allocation3 + $0x1d0] sm:$0xff]
        %v1456 = vld [vmem:[#allocation3 + $0x1d8] sm:$0xff]
        %v1457 = vld [vmem:[#allocation3 + $0x1e0] sm:$0xff]
        %v1458 = vld [vmem:[#allocation3 + $0x1e8] sm:$0xff]
        %v1459 = vld [vmem:[#allocation3 + $0x1f0] sm:$0xff]
        %v1460 = vld [vmem:[#allocation3 + $0x1f8] sm:$0xff]
        %s1461 = sshra.s32 %s358, 3
        %s1462 = sand.u32 %s358, 7
        %s1463 = smul.u32 %s1461, 2
        %s1464 = smul.addr %s1463, 8
        %s1465 = scalar_lea.vmem [#allocation2], %s1464
        %v1466 = vld [vmem:[%s1465] sm:$0xff]
        %v1467 = vld [vmem:[%s1465 + $0x8] sm:$0xff]
        %v1468 = vld [vmem:[%s1465 + $0x10] sm:$0xff]
        %v1469 = vld [vmem:[%s1465 + $0x18] sm:$0xff]
        %v1470 = vld [vmem:[%s1465 + $0x20] sm:$0xff]
        %v1471 = vld [vmem:[%s1465 + $0x28] sm:$0xff]
        %v1472 = vld [vmem:[%s1465 + $0x30] sm:$0xff]
        %v1473 = vld [vmem:[%s1465 + $0x38] sm:$0xff]
        %v1474 = vld [vmem:[%s1465 + $0x40] sm:$0xff]
        %v1475 = vld [vmem:[%s1465 + $0x48] sm:$0xff]
        %v1476 = vld [vmem:[%s1465 + $0x50] sm:$0xff]
        %v1477 = vld [vmem:[%s1465 + $0x58] sm:$0xff]
        %v1478 = vld [vmem:[%s1465 + $0x60] sm:$0xff]
        %v1479 = vld [vmem:[%s1465 + $0x68] sm:$0xff]
        %v1480 = vld [vmem:[%s1465 + $0x70] sm:$0xff]
        %v1481 = vld [vmem:[%s1465 + $0x78] sm:$0xff]
        %v1482 = vld [vmem:[%s1465 + $0x80] sm:$0xff]
        %v1483 = vld [vmem:[%s1465 + $0x88] sm:$0xff]
        %v1484 = vld [vmem:[%s1465 + $0x90] sm:$0xff]
        %v1485 = vld [vmem:[%s1465 + $0x98] sm:$0xff]
        %v1486 = vld [vmem:[%s1465 + $0xa0] sm:$0xff]
        %v1487 = vld [vmem:[%s1465 + $0xa8] sm:$0xff]
        %v1488 = vld [vmem:[%s1465 + $0xb0] sm:$0xff]
        %v1489 = vld [vmem:[%s1465 + $0xb8] sm:$0xff]
        %v1490 = vld [vmem:[%s1465 + $0xc0] sm:$0xff]
        %v1491 = vld [vmem:[%s1465 + $0xc8] sm:$0xff]
        %v1492 = vld [vmem:[%s1465 + $0xd0] sm:$0xff]
        %v1493 = vld [vmem:[%s1465 + $0xd8] sm:$0xff]
        %v1494 = vld [vmem:[%s1465 + $0xe0] sm:$0xff]
        %v1495 = vld [vmem:[%s1465 + $0xe8] sm:$0xff]
        %v1496 = vld [vmem:[%s1465 + $0xf0] sm:$0xff]
        %v1497 = vld [vmem:[%s1465 + $0xf8] sm:$0xff]
        %v1498 = vld [vmem:[%s1465 + $0x100] sm:$0xff]
        %v1499 = vld [vmem:[%s1465 + $0x108] sm:$0xff]
        %v1500 = vld [vmem:[%s1465 + $0x110] sm:$0xff]
        %v1501 = vld [vmem:[%s1465 + $0x118] sm:$0xff]
        %v1502 = vld [vmem:[%s1465 + $0x120] sm:$0xff]
        %v1503 = vld [vmem:[%s1465 + $0x128] sm:$0xff]
        %v1504 = vld [vmem:[%s1465 + $0x130] sm:$0xff]
        %v1505 = vld [vmem:[%s1465 + $0x138] sm:$0xff]
        %v1506 = vld [vmem:[%s1465 + $0x140] sm:$0xff]
        %v1507 = vld [vmem:[%s1465 + $0x148] sm:$0xff]
        %v1508 = vld [vmem:[%s1465 + $0x150] sm:$0xff]
        %v1509 = vld [vmem:[%s1465 + $0x158] sm:$0xff]
        %v1510 = vld [vmem:[%s1465 + $0x160] sm:$0xff]
        %v1511 = vld [vmem:[%s1465 + $0x168] sm:$0xff]
        %v1512 = vld [vmem:[%s1465 + $0x170] sm:$0xff]
        %v1513 = vld [vmem:[%s1465 + $0x178] sm:$0xff]
        %v1514 = vld [vmem:[%s1465 + $0x180] sm:$0xff]
        %v1515 = vld [vmem:[%s1465 + $0x188] sm:$0xff]
        %v1516 = vld [vmem:[%s1465 + $0x190] sm:$0xff]
        %v1517 = vld [vmem:[%s1465 + $0x198] sm:$0xff]
        %v1518 = vld [vmem:[%s1465 + $0x1a0] sm:$0xff]
        %v1519 = vld [vmem:[%s1465 + $0x1a8] sm:$0xff]
        %v1520 = vld [vmem:[%s1465 + $0x1b0] sm:$0xff]
        %v1521 = vld [vmem:[%s1465 + $0x1b8] sm:$0xff]
        %v1522 = vld [vmem:[%s1465 + $0x1c0] sm:$0xff]
        %v1523 = vld [vmem:[%s1465 + $0x1c8] sm:$0xff]
        %v1524 = vld [vmem:[%s1465 + $0x1d0] sm:$0xff]
        %v1525 = vld [vmem:[%s1465 + $0x1d8] sm:$0xff]
        %v1526 = vld [vmem:[%s1465 + $0x1e0] sm:$0xff]
        %v1527 = vld [vmem:[%s1465 + $0x1e8] sm:$0xff]
        %v1528 = vld [vmem:[%s1465 + $0x1f0] sm:$0xff]
        %v1529 = vld [vmem:[%s1465 + $0x1f8] sm:$0xff]
        %1530 = vmatprep.subr.mxu0 %v1497
        %1531 = vmatpush1.msra.mxu0 %v1496
        %1532 = vmatprep.subr.mxu0 %v1495
        %1533 = vmatpush1.msra.mxu0 %v1494
        %1534 = vmatprep.subr.mxu0 %v1493
        %1535 = vmatpush1.msra.mxu0 %v1492
        %1536 = vmatprep.subr.mxu0 %v1491
        %1537 = vmatpush1.msra.mxu0 %v1490
        %1538 = vmatprep.subr.mxu0 %v1489
        %1539 = vmatpush1.msra.mxu0 %v1488
        %1540 = vmatprep.subr.mxu0 %v1487
        %1541 = vmatpush1.msra.mxu0 %v1486
        %1542 = vmatprep.subr.mxu0 %v1485
        %1543 = vmatpush1.msra.mxu0 %v1484
        %1544 = vmatprep.subr.mxu0 %v1483
        %1545 = vmatpush1.msra.mxu0 %v1482
        %1546 = vmatprep.subr.mxu0 %v1481
        %1547 = vmatpush1.msra.mxu0 %v1480
        %1548 = vmatprep.subr.mxu0 %v1479
        %1549 = vmatpush1.msra.mxu0 %v1478
        %1550 = vmatprep.subr.mxu0 %v1477
        %1551 = vmatpush1.msra.mxu0 %v1476
        %1552 = vmatprep.subr.mxu0 %v1475
        %1553 = vmatpush1.msra.mxu0 %v1474
        %1554 = vmatprep.subr.mxu0 %v1473
        %1555 = vmatpush1.msra.mxu0 %v1472
        %1556 = vmatprep.subr.mxu0 %v1471
        %1557 = vmatpush1.msra.mxu0 %v1470
        %1558 = vmatprep.subr.mxu0 %v1469
        %1559 = vmatpush1.msra.mxu0 %v1468
        %1560 = vmatprep.subr.mxu0 %v1467
        %1561 = vmatpush1.msra.mxu0 %v1466
        %1562 = vmatprep.subr.mxu0 %v1529
        %1563 = vmatpush2.msra.mxu0 %v1528
        %1564 = vmatprep.subr.mxu0 %v1527
        %1565 = vmatpush2.msra.mxu0 %v1526
        %1566 = vmatprep.subr.mxu0 %v1525
        %1567 = vmatpush2.msra.mxu0 %v1524
        %1568 = vmatprep.subr.mxu0 %v1523
        %1569 = vmatpush2.msra.mxu0 %v1522
        %1570 = vmatprep.subr.mxu0 %v1521
        %1571 = vmatpush2.msra.mxu0 %v1520
        %1572 = vmatprep.subr.mxu0 %v1519
        %1573 = vmatpush2.msra.mxu0 %v1518
        %1574 = vmatprep.subr.mxu0 %v1517
        %1575 = vmatpush2.msra.mxu0 %v1516
        %1576 = vmatprep.subr.mxu0 %v1515
        %1577 = vmatpush2.msra.mxu0 %v1514
        %1578 = vmatprep.subr.mxu0 %v1513
        %1579 = vmatpush2.msra.mxu0 %v1512
        %1580 = vmatprep.subr.mxu0 %v1511
        %1581 = vmatpush2.msra.mxu0 %v1510
        %1582 = vmatprep.subr.mxu0 %v1509
        %1583 = vmatpush2.msra.mxu0 %v1508
        %1584 = vmatprep.subr.mxu0 %v1507
        %1585 = vmatpush2.msra.mxu0 %v1506
        %1586 = vmatprep.subr.mxu0 %v1505
        %1587 = vmatpush2.msra.mxu0 %v1504
        %1588 = vmatprep.subr.mxu0 %v1503
        %1589 = vmatpush2.msra.mxu0 %v1502
        %1590 = vmatprep.subr.mxu0 %v1501
        %1591 = vmatpush2.msra.mxu0 %v1500
        %1592 = vmatprep.subr.mxu0 %v1499
        %1593 = vmatpush2.msra.mxu0 %v1498
        %1594 = vmatprep.mubr.f32.mxu0 %v1398
        %1595 = vmatmul.mubr.f32.gmra.mxu0 %v1397
        %v1596 = vpop.f32.mrf.mxu0
        %v1597 = vadd.f32 0.0, %v1596
        %v1598 = vpop.f32.mrf.mxu0
        %v1599 = vadd.f32 0.0, %v1598
        %1600 = vmatprep.mubr.f32.mxu0 %v1400
        %1601 = vmatmul.mubr.f32.gmra.mxu0 %v1399
        %v1602 = vpop.f32.mrf.mxu0
        %v1603 = vadd.f32 0.0, %v1602
        %v1604 = vpop.f32.mrf.mxu0
        %v1605 = vadd.f32 0.0, %v1604
        %1606 = vmatprep.mubr.f32.mxu0 %v1402
        %1607 = vmatmul.mubr.f32.gmra.mxu0 %v1401
        %v1608 = vpop.f32.mrf.mxu0
        %v1609 = vadd.f32 0.0, %v1608
        %v1610 = vpop.f32.mrf.mxu0
        %v1611 = vadd.f32 0.0, %v1610
        %1612 = vmatprep.mubr.f32.mxu0 %v1404
        %1613 = vmatmul.mubr.f32.gmra.mxu0 %v1403
        %v1614 = vpop.f32.mrf.mxu0
        %v1615 = vadd.f32 0.0, %v1614
        %v1616 = vpop.f32.mrf.mxu0
        %v1617 = vadd.f32 0.0, %v1616
        %1618 = vmatprep.mubr.f32.mxu0 %v1406
        %1619 = vmatmul.mubr.f32.gmra.mxu0 %v1405
        %v1620 = vpop.f32.mrf.mxu0
        %v1621 = vadd.f32 0.0, %v1620
        %v1622 = vpop.f32.mrf.mxu0
        %v1623 = vadd.f32 0.0, %v1622
        %1624 = vmatprep.mubr.f32.mxu0 %v1408
        %1625 = vmatmul.mubr.f32.gmra.mxu0 %v1407
        %v1626 = vpop.f32.mrf.mxu0
        %v1627 = vadd.f32 0.0, %v1626
        %v1628 = vpop.f32.mrf.mxu0
        %v1629 = vadd.f32 0.0, %v1628
        %1630 = vmatprep.mubr.f32.mxu0 %v1410
        %1631 = vmatmul.mubr.f32.gmra.mxu0 %v1409
        %v1632 = vpop.f32.mrf.mxu0
        %v1633 = vadd.f32 0.0, %v1632
        %v1634 = vpop.f32.mrf.mxu0
        %v1635 = vadd.f32 0.0, %v1634
        %1636 = vmatprep.mubr.f32.mxu0 %v1412
        %1637 = vmatmul.mubr.f32.gmra.mxu0 %v1411
        %v1638 = vpop.f32.mrf.mxu0
        %v1639 = vadd.f32 0.0, %v1638
        %v1640 = vpop.f32.mrf.mxu0
        %v1641 = vadd.f32 0.0, %v1640
        %1642 = vmatprep.mubr.f32.mxu0 %v1414
        %1643 = vmatmul.mubr.f32.gmra.mxu0 %v1413
        %v1644 = vpop.f32.mrf.mxu0
        %v1645 = vadd.f32 0.0, %v1644
        %v1646 = vpop.f32.mrf.mxu0
        %v1647 = vadd.f32 0.0, %v1646
        %1648 = vmatprep.mubr.f32.mxu0 %v1416
        %1649 = vmatmul.mubr.f32.gmra.mxu0 %v1415
        %v1650 = vpop.f32.mrf.mxu0
        %v1651 = vadd.f32 0.0, %v1650
        %v1652 = vpop.f32.mrf.mxu0
        %v1653 = vadd.f32 0.0, %v1652
        %1654 = vmatprep.mubr.f32.mxu0 %v1418
        %1655 = vmatmul.mubr.f32.gmra.mxu0 %v1417
        %v1656 = vpop.f32.mrf.mxu0
        %v1657 = vadd.f32 0.0, %v1656
        %v1658 = vpop.f32.mrf.mxu0
        %v1659 = vadd.f32 0.0, %v1658
        %1660 = vmatprep.mubr.f32.mxu0 %v1420
        %1661 = vmatmul.mubr.f32.gmra.mxu0 %v1419
        %v1662 = vpop.f32.mrf.mxu0
        %v1663 = vadd.f32 0.0, %v1662
        %v1664 = vpop.f32.mrf.mxu0
        %v1665 = vadd.f32 0.0, %v1664
        %1666 = vmatprep.mubr.f32.mxu0 %v1422
        %1667 = vmatmul.mubr.f32.gmra.mxu0 %v1421
        %v1668 = vpop.f32.mrf.mxu0
        %v1669 = vadd.f32 0.0, %v1668
        %v1670 = vpop.f32.mrf.mxu0
        %v1671 = vadd.f32 0.0, %v1670
        %1672 = vmatprep.mubr.f32.mxu0 %v1424
        %1673 = vmatmul.mubr.f32.gmra.mxu0 %v1423
        %v1674 = vpop.f32.mrf.mxu0
        %v1675 = vadd.f32 0.0, %v1674
        %v1676 = vpop.f32.mrf.mxu0
        %v1677 = vadd.f32 0.0, %v1676
        %1678 = vmatprep.mubr.f32.mxu0 %v1426
        %1679 = vmatmul.mubr.f32.gmra.mxu0 %v1425
        %v1680 = vpop.f32.mrf.mxu0
        %v1681 = vadd.f32 0.0, %v1680
        %v1682 = vpop.f32.mrf.mxu0
        %v1683 = vadd.f32 0.0, %v1682
        %1684 = vmatprep.mubr.f32.mxu0 %v1428
        %1685 = vmatmul.mubr.f32.gmra.mxu0 %v1427
        %v1686 = vpop.f32.mrf.mxu0
        %v1687 = vadd.f32 0.0, %v1686
        %v1688 = vpop.f32.mrf.mxu0
        %v1689 = vadd.f32 0.0, %v1688
        %1690 = vmatprep.mubr.f32.mxu0 %v1430
        %1691 = vmatmul.mubr.f32.gmra.mxu0 %v1429
        %v1692 = vpop.f32.mrf.mxu0
        %v1693 = vadd.f32 0.0, %v1692
        %v1694 = vpop.f32.mrf.mxu0
        %v1695 = vadd.f32 0.0, %v1694
        %1696 = vmatprep.mubr.f32.mxu0 %v1432
        %1697 = vmatmul.mubr.f32.gmra.mxu0 %v1431
        %v1698 = vpop.f32.mrf.mxu0
        %v1699 = vadd.f32 0.0, %v1698
        %v1700 = vpop.f32.mrf.mxu0
        %v1701 = vadd.f32 0.0, %v1700
        %1702 = vmatprep.mubr.f32.mxu0 %v1434
        %1703 = vmatmul.mubr.f32.gmra.mxu0 %v1433
        %v1704 = vpop.f32.mrf.mxu0
        %v1705 = vadd.f32 0.0, %v1704
        %v1706 = vpop.f32.mrf.mxu0
        %v1707 = vadd.f32 0.0, %v1706
        %1708 = vmatprep.mubr.f32.mxu0 %v1436
        %1709 = vmatmul.mubr.f32.gmra.mxu0 %v1435
        %v1710 = vpop.f32.mrf.mxu0
        %v1711 = vadd.f32 0.0, %v1710
        %v1712 = vpop.f32.mrf.mxu0
        %v1713 = vadd.f32 0.0, %v1712
        %1714 = vmatprep.mubr.f32.mxu0 %v1438
        %1715 = vmatmul.mubr.f32.gmra.mxu0 %v1437
        %v1716 = vpop.f32.mrf.mxu0
        %v1717 = vadd.f32 0.0, %v1716
        %v1718 = vpop.f32.mrf.mxu0
        %v1719 = vadd.f32 0.0, %v1718
        %1720 = vmatprep.mubr.f32.mxu0 %v1440
        %1721 = vmatmul.mubr.f32.gmra.mxu0 %v1439
        %v1722 = vpop.f32.mrf.mxu0
        %v1723 = vadd.f32 0.0, %v1722
        %v1724 = vpop.f32.mrf.mxu0
        %v1725 = vadd.f32 0.0, %v1724
        %1726 = vmatprep.mubr.f32.mxu0 %v1442
        %1727 = vmatmul.mubr.f32.gmra.mxu0 %v1441
        %v1728 = vpop.f32.mrf.mxu0
        %v1729 = vadd.f32 0.0, %v1728
        %v1730 = vpop.f32.mrf.mxu0
        %v1731 = vadd.f32 0.0, %v1730
        %1732 = vmatprep.mubr.f32.mxu0 %v1444
        %1733 = vmatmul.mubr.f32.gmra.mxu0 %v1443
        %v1734 = vpop.f32.mrf.mxu0
        %v1735 = vadd.f32 0.0, %v1734
        %v1736 = vpop.f32.mrf.mxu0
        %v1737 = vadd.f32 0.0, %v1736
        %1738 = vmatprep.mubr.f32.mxu0 %v1446
        %1739 = vmatmul.mubr.f32.gmra.mxu0 %v1445
        %v1740 = vpop.f32.mrf.mxu0
        %v1741 = vadd.f32 0.0, %v1740
        %v1742 = vpop.f32.mrf.mxu0
        %v1743 = vadd.f32 0.0, %v1742
        %1744 = vmatprep.mubr.f32.mxu0 %v1448
        %1745 = vmatmul.mubr.f32.gmra.mxu0 %v1447
        %v1746 = vpop.f32.mrf.mxu0
        %v1747 = vadd.f32 0.0, %v1746
        %v1748 = vpop.f32.mrf.mxu0
        %v1749 = vadd.f32 0.0, %v1748
        %1750 = vmatprep.mubr.f32.mxu0 %v1450
        %1751 = vmatmul.mubr.f32.gmra.mxu0 %v1449
        %v1752 = vpop.f32.mrf.mxu0
        %v1753 = vadd.f32 0.0, %v1752
        %v1754 = vpop.f32.mrf.mxu0
        %v1755 = vadd.f32 0.0, %v1754
        %1756 = vmatprep.mubr.f32.mxu0 %v1452
        %1757 = vmatmul.mubr.f32.gmra.mxu0 %v1451
        %v1758 = vpop.f32.mrf.mxu0
        %v1759 = vadd.f32 0.0, %v1758
        %v1760 = vpop.f32.mrf.mxu0
        %v1761 = vadd.f32 0.0, %v1760
        %1762 = vmatprep.mubr.f32.mxu0 %v1454
        %1763 = vmatmul.mubr.f32.gmra.mxu0 %v1453
        %v1764 = vpop.f32.mrf.mxu0
        %v1765 = vadd.f32 0.0, %v1764
        %v1766 = vpop.f32.mrf.mxu0
        %v1767 = vadd.f32 0.0, %v1766
        %1768 = vmatprep.mubr.f32.mxu0 %v1456
        %1769 = vmatmul.mubr.f32.gmra.mxu0 %v1455
        %v1770 = vpop.f32.mrf.mxu0
        %v1771 = vadd.f32 0.0, %v1770
        %v1772 = vpop.f32.mrf.mxu0
        %v1773 = vadd.f32 0.0, %v1772
        %1774 = vmatprep.mubr.f32.mxu0 %v1458
        %1775 = vmatmul.mubr.f32.gmra.mxu0 %v1457
        %v1776 = vpop.f32.mrf.mxu0
        %v1777 = vadd.f32 0.0, %v1776
        %v1778 = vpop.f32.mrf.mxu0
        %v1779 = vadd.f32 0.0, %v1778
        %1780 = vmatprep.mubr.f32.mxu0 %v1460
        %1781 = vmatmul.mubr.f32.gmra.mxu0 %v1459
        %v1782 = vpop.f32.mrf.mxu0
        %v1783 = vadd.f32 0.0, %v1782
        %v1784 = vpop.f32.mrf.mxu0
        %v1785 = vadd.f32 0.0, %v1784
        %1786 = vdwg.mxu0
        %v1787 = vadd.f32 %v1333, %v1597
        %v1788 = vadd.f32 %v1334, %v1599
        %v1789 = vadd.f32 %v1335, %v1603
        %v1790 = vadd.f32 %v1336, %v1605
        %v1791 = vadd.f32 %v1337, %v1609
        %v1792 = vadd.f32 %v1338, %v1611
        %v1793 = vadd.f32 %v1339, %v1615
        %v1794 = vadd.f32 %v1340, %v1617
        %v1795 = vadd.f32 %v1341, %v1621
        %v1796 = vadd.f32 %v1342, %v1623
        %v1797 = vadd.f32 %v1343, %v1627
        %v1798 = vadd.f32 %v1344, %v1629
        %v1799 = vadd.f32 %v1345, %v1633
        %v1800 = vadd.f32 %v1346, %v1635
        %v1801 = vadd.f32 %v1347, %v1639
        %v1802 = vadd.f32 %v1348, %v1641
        %v1803 = vadd.f32 %v1349, %v1645
        %v1804 = vadd.f32 %v1350, %v1647
        %v1805 = vadd.f32 %v1351, %v1651
        %v1806 = vadd.f32 %v1352, %v1653
        %v1807 = vadd.f32 %v1353, %v1657
        %v1808 = vadd.f32 %v1354, %v1659
        %v1809 = vadd.f32 %v1355, %v1663
        %v1810 = vadd.f32 %v1356, %v1665
        %v1811 = vadd.f32 %v1357, %v1669
        %v1812 = vadd.f32 %v1358, %v1671
        %v1813 = vadd.f32 %v1359, %v1675
        %v1814 = vadd.f32 %v1360, %v1677
        %v1815 = vadd.f32 %v1361, %v1681
        %v1816 = vadd.f32 %v1362, %v1683
        %v1817 = vadd.f32 %v1363, %v1687
        %v1818 = vadd.f32 %v1364, %v1689
        %v1819 = vadd.f32 %v1365, %v1693
        %v1820 = vadd.f32 %v1366, %v1695
        %v1821 = vadd.f32 %v1367, %v1699
        %v1822 = vadd.f32 %v1368, %v1701
        %v1823 = vadd.f32 %v1369, %v1705
        %v1824 = vadd.f32 %v1370, %v1707
        %v1825 = vadd.f32 %v1371, %v1711
        %v1826 = vadd.f32 %v1372, %v1713
        %v1827 = vadd.f32 %v1373, %v1717
        %v1828 = vadd.f32 %v1374, %v1719
        %v1829 = vadd.f32 %v1375, %v1723
        %v1830 = vadd.f32 %v1376, %v1725
        %v1831 = vadd.f32 %v1377, %v1729
        %v1832 = vadd.f32 %v1378, %v1731
        %v1833 = vadd.f32 %v1379, %v1735
        %v1834 = vadd.f32 %v1380, %v1737
        %v1835 = vadd.f32 %v1381, %v1741
        %v1836 = vadd.f32 %v1382, %v1743
        %v1837 = vadd.f32 %v1383, %v1747
        %v1838 = vadd.f32 %v1384, %v1749
        %v1839 = vadd.f32 %v1385, %v1753
        %v1840 = vadd.f32 %v1386, %v1755
        %v1841 = vadd.f32 %v1387, %v1759
        %v1842 = vadd.f32 %v1388, %v1761
        %v1843 = vadd.f32 %v1389, %v1765
        %v1844 = vadd.f32 %v1390, %v1767
        %v1845 = vadd.f32 %v1391, %v1771
        %v1846 = vadd.f32 %v1392, %v1773
        %v1847 = vadd.f32 %v1393, %v1777
        %v1848 = vadd.f32 %v1394, %v1779
        %v1849 = vadd.f32 %v1395, %v1783
        %v1850 = vadd.f32 %v1396, %v1785
        %1851 = vst [vmem:[%s325] sm:$0xff] %v1787
        %1852 = vst [vmem:[%s325 + $0x8] sm:$0xff] %v1788
        %1853 = vst [vmem:[%s325 + $0x10] sm:$0xff] %v1789
        %1854 = vst [vmem:[%s325 + $0x18] sm:$0xff] %v1790
        %1855 = vst [vmem:[%s325 + $0x20] sm:$0xff] %v1791
        %1856 = vst [vmem:[%s325 + $0x28] sm:$0xff] %v1792
        %1857 = vst [vmem:[%s325 + $0x30] sm:$0xff] %v1793
        %1858 = vst [vmem:[%s325 + $0x38] sm:$0xff] %v1794
        %1859 = vst [vmem:[%s325 + $0x40] sm:$0xff] %v1795
        %1860 = vst [vmem:[%s325 + $0x48] sm:$0xff] %v1796
        %1861 = vst [vmem:[%s325 + $0x50] sm:$0xff] %v1797
        %1862 = vst [vmem:[%s325 + $0x58] sm:$0xff] %v1798
        %1863 = vst [vmem:[%s325 + $0x60] sm:$0xff] %v1799
        %1864 = vst [vmem:[%s325 + $0x68] sm:$0xff] %v1800
        %1865 = vst [vmem:[%s325 + $0x70] sm:$0xff] %v1801
        %1866 = vst [vmem:[%s325 + $0x78] sm:$0xff] %v1802
        %1867 = vst [vmem:[%s325 + $0x80] sm:$0xff] %v1803
        %1868 = vst [vmem:[%s325 + $0x88] sm:$0xff] %v1804
        %1869 = vst [vmem:[%s325 + $0x90] sm:$0xff] %v1805
        %1870 = vst [vmem:[%s325 + $0x98] sm:$0xff] %v1806
        %1871 = vst [vmem:[%s325 + $0xa0] sm:$0xff] %v1807
        %1872 = vst [vmem:[%s325 + $0xa8] sm:$0xff] %v1808
        %1873 = vst [vmem:[%s325 + $0xb0] sm:$0xff] %v1809
        %1874 = vst [vmem:[%s325 + $0xb8] sm:$0xff] %v1810
        %1875 = vst [vmem:[%s325 + $0xc0] sm:$0xff] %v1811
        %1876 = vst [vmem:[%s325 + $0xc8] sm:$0xff] %v1812
        %1877 = vst [vmem:[%s325 + $0xd0] sm:$0xff] %v1813
        %1878 = vst [vmem:[%s325 + $0xd8] sm:$0xff] %v1814
        %1879 = vst [vmem:[%s325 + $0xe0] sm:$0xff] %v1815
        %1880 = vst [vmem:[%s325 + $0xe8] sm:$0xff] %v1816
        %1881 = vst [vmem:[%s325 + $0xf0] sm:$0xff] %v1817
        %1882 = vst [vmem:[%s325 + $0xf8] sm:$0xff] %v1818
        %1883 = vst [vmem:[%s325 + $0x100] sm:$0xff] %v1819
        %1884 = vst [vmem:[%s325 + $0x108] sm:$0xff] %v1820
        %1885 = vst [vmem:[%s325 + $0x110] sm:$0xff] %v1821
        %1886 = vst [vmem:[%s325 + $0x118] sm:$0xff] %v1822
        %1887 = vst [vmem:[%s325 + $0x120] sm:$0xff] %v1823
        %1888 = vst [vmem:[%s325 + $0x128] sm:$0xff] %v1824
        %1889 = vst [vmem:[%s325 + $0x130] sm:$0xff] %v1825
        %1890 = vst [vmem:[%s325 + $0x138] sm:$0xff] %v1826
        %1891 = vst [vmem:[%s325 + $0x140] sm:$0xff] %v1827
        %1892 = vst [vmem:[%s325 + $0x148] sm:$0xff] %v1828
        %1893 = vst [vmem:[%s325 + $0x150] sm:$0xff] %v1829
        %1894 = vst [vmem:[%s325 + $0x158] sm:$0xff] %v1830
        %1895 = vst [vmem:[%s325 + $0x160] sm:$0xff] %v1831
        %1896 = vst [vmem:[%s325 + $0x168] sm:$0xff] %v1832
        %1897 = vst [vmem:[%s325 + $0x170] sm:$0xff] %v1833
        %1898 = vst [vmem:[%s325 + $0x178] sm:$0xff] %v1834
        %1899 = vst [vmem:[%s325 + $0x180] sm:$0xff] %v1835
        %1900 = vst [vmem:[%s325 + $0x188] sm:$0xff] %v1836
        %1901 = vst [vmem:[%s325 + $0x190] sm:$0xff] %v1837
        %1902 = vst [vmem:[%s325 + $0x198] sm:$0xff] %v1838
        %1903 = vst [vmem:[%s325 + $0x1a0] sm:$0xff] %v1839
        %1904 = vst [vmem:[%s325 + $0x1a8] sm:$0xff] %v1840
        %1905 = vst [vmem:[%s325 + $0x1b0] sm:$0xff] %v1841
        %1906 = vst [vmem:[%s325 + $0x1b8] sm:$0xff] %v1842
        %1907 = vst [vmem:[%s325 + $0x1c0] sm:$0xff] %v1843
        %1908 = vst [vmem:[%s325 + $0x1c8] sm:$0xff] %v1844
        %1909 = vst [vmem:[%s325 + $0x1d0] sm:$0xff] %v1845
        %1910 = vst [vmem:[%s325 + $0x1d8] sm:$0xff] %v1846
        %1911 = vst [vmem:[%s325 + $0x1e0] sm:$0xff] %v1847
        %1912 = vst [vmem:[%s325 + $0x1e8] sm:$0xff] %v1848
        %1913 = vst [vmem:[%s325 + $0x1f0] sm:$0xff] %v1849
        %1914 = vst [vmem:[%s325 + $0x1f8] sm:$0xff] %v1850
        %s1915 = sand.u32 %s185, 1
        %s1916 = scalar_lea.sflag [#allocation5], %s1915
        %s1917 = sand.u32 %s185, 1
        %s1918 = smul.addr %s1917, 512
        %s1919 = scalar_lea.vmem [#allocation6], %s1918
        // Predicated region
        $region53: #{tpu_custom_call.1} parent=39 // pred_check
          %p1920 = pneg %p195
        $region54: #{tpu_custom_call.1} parent=39 // pred_check_branch
          %1922 = sbr.rel (%p1920) target = $region56
        $region55: #{tpu_custom_call.1} parent=39 // pred_region
          %s1923 = smul.u32 32, %s26
          %s1924 = smul.u32 2, %s25
          %s1926 = ssub.s32 8192, 8192
          %1927 = vsyncadd %s1916, %s1926
          %s1928 = smul.addr %s1923, 4
          %s1929 = sadd.s32 %s1924, %s1928
          %s1930 = smul.addr %s1929, 128
          %s1931 = scalar_lea.hbm %s5, %s1930
          %s1932 = sshll.u32 %s1919, 4
          %s1933 = int_to_ptr.vmem [resolvable:$true] %s1932
          %1938 = dma.vmem_to_hbm [thread:$0]  %s1933, 8192, %s1931, %s1916, 256, 512, 16
        $region56: #{tpu_custom_call.1} parent=39 // pred_fallthru
          _
      $region40: #{tpu_custom_call.1} parent=5 // pred_fallthru
        _
      %p1939 = scmp.le.s32.totalorder 2, %s15
      // Predicated region
      $region57: #{tpu_custom_call.1} parent=5 // pred_check
        %p1940 = pneg %p1939
      $region58: #{tpu_custom_call.1} parent=5 // pred_check_branch
        %1942 = sbr.rel (%p1940) target = $region60
      $region59: #{tpu_custom_call.1} parent=5 // pred_region
        %s1943 = ssub.s32 %s15, 2
        // Predicated region
        $region61: #{tpu_custom_call.1} parent=59 // pred_check
          %p1944 = pneg %p201
        $region62: #{tpu_custom_call.1} parent=59 // pred_check_branch
          %1946 = sbr.rel (%p1944) target = $region64
        $region63: #{tpu_custom_call.1} parent=59 // pred_region
          %s1947 = sand.u32 %s186, 1
          %s1948 = scalar_lea.sflag [#allocation5], %s1947
          %s1949 = sand.u32 %s186, 1
          %s1950 = smul.addr %s1949, 512
          %s1951 = scalar_lea.vmem [#allocation6], %s1950
          %1952 = dma.done %s1948, 8192
        $region64: #{tpu_custom_call.1} parent=59 // pred_fallthru
          _
      $region60: #{tpu_custom_call.1} parent=5 // pred_fallthru
        _
    $region6: #{tpu_custom_call.1} parent=1 // loop_footer
      %s19 = sadd.s32 1, %s15
    $region7: #{tpu_custom_call.1} parent=1 // loop_footer_branch
      %14 = sbr.rel target = $region3
    $region8: #{tpu_custom_call.1} parent=1 // loop_exit
      _
    %1953 = vsyncpa [#allocation4], 1
    %s1954 = scalar_lea.sflag [#allocation4], 1
    %1955 = vsyncpa %s1954, 1
    %1956 = vsyncpa [#allocation5], 1
    %s1957 = scalar_lea.sflag [#allocation5], 1
    %1958 = vsyncpa %s1957, 1

</llo_original>
